<compile_context>
chip_gen: v6e
topology: v6e:2x2x1
jax: 0.10.0
libtpu: 0.0.40
codegen_flags: <defaults>
</compile_context>

<pallas_src>
import functools

import numpy as np
import jax
import jax.numpy as jnp
from jax.experimental import pallas as pl
from jax.experimental.pallas import tpu as pltpu

INPUT_CH = 3
INPUT_CH_VIEWS = 3
C_IN = INPUT_CH + INPUT_CH_VIEWS   # 6 real input channels
C_PAD = 8                          # input padded to 8 lanes (pts|views|0)
W = 32
D = 2                              # two pts_linears layers (hardcoded in the body)
K_VIEW = W + C_PAD                 # 40: merged view-layer contraction dim
OUT_LANES = 128                    # lane-dense output; lanes 0:4 = [rgb, sigma]

# Row layout of the per-model packed weight slab (RTOT, 128), bf16.
# Block starts are 16-aligned (bf16 sublane pack = 16 rows).
ROW_W0 = 0       # rows   0:8    [0:3,  0:32] pts layer 0 (x(8) -> 32; rows 3:8 zero)
ROW_W1 = 16      # rows  16:48   [:,    0:32] pts layer 1 (32 -> 32)
ROW_WV = 48      # rows  48:88   [:,    0:32] fused feature+view ([h|x](40) -> 32)
ROW_WFIN = 96    # rows  96:160  [:,    0:128] fused rgb+sigma head ([hv|h](64) -> 128)
ROW_BIAS = 160   # rows 160:164  b0, b1, bv', b_final
RTOT = 176       # multiple of 16


def _kilonerf_kernel(tile_model_ref, num_used_ref, x_ref, w_ref, o_ref):
    # tile_model_ref (SMEM, scalar-prefetched) is only consumed by the
    # index_maps; num_used_ref gates dead (pure-padding) tiles.
    del tile_model_ref

    @pl.when(pl.program_id(0) < num_used_ref[0])
    def _():
        bf16, f32 = jnp.bfloat16, jnp.float32

        x = x_ref[...]                                   # (T, 8) bf16 = [pts|views|0]

        def wmat(row, k, n):
            return w_ref[row:row + k, 0:n]               # (k, n) bf16

        def bvec(slot, n):
            r = ROW_BIAS + slot
            return w_ref[r:r + 1, 0:n].astype(f32)       # (1, n) f32

        # pts MLP (D = 2): bf16 matmuls, f32 accumulation + bias, ReLU.
        # Layer 0 consumes the whole padded x block (zero weight rows for
        # views/pad channels) -- no lane slice, exact.
        h = jnp.dot(x, wmat(ROW_W0, C_PAD, W),
                    preferred_element_type=f32) + bvec(0, W)
        h = jnp.maximum(h, 0.0)
        h = jnp.dot(h.astype(bf16), wmat(ROW_W1, W, W),
                    preferred_element_type=f32) + bvec(1, W)
        h = jnp.maximum(h, 0.0)
        h_bf = h.astype(bf16)

        # Fused feature+view layer:
        #   hv = relu([h | x] @ [Wf@Wvf ; 0 ; Wvv ; 0] + (bf@Wvf + bv))
        # (feature_linear has no ReLU in the reference, so the fold is exact
        # up to bf16 rounding of the pre-multiplied weights.)
        lhs_v = jnp.concatenate([h_bf, x], axis=-1)       # (T, 40)
        hv = jnp.dot(lhs_v, wmat(ROW_WV, K_VIEW, W),
                     preferred_element_type=f32) + bvec(2, W)
        hv = jnp.maximum(hv, 0.0)

        # Fused rgb+sigma head: one (T,64)@(64,128) matmul whose result is the
        # lane-dense output block (rgb -> lanes 0:3, sigma -> lane 3, rest 0).
        lhs_o = jnp.concatenate([hv.astype(bf16), h_bf], axis=-1)   # (T, 64)
        out = jnp.dot(lhs_o, wmat(ROW_WFIN, 2 * W, OUT_LANES),
                      preferred_element_type=f32) + bvec(3, OUT_LANES)
        o_ref[...] = out.astype(o_ref.dtype)


def batched_kilonerf_forward(x, model_indices, wpack, *, tile=1024):
    """x: (N, 6) f32; model_indices: (N,) int; wpack: (M, RTOT, 128) bf16."""
    N, C = x.shape
    assert C == C_IN
    M = wpack.shape[0]
    assert tile % 16 == 0            # bf16 input block: min sublane tile is 16

    idx = model_indices.astype(jnp.int32)

    # ---- group points by sub-model: sort, pad every group to a tile multiple.
    order = jnp.argsort(idx)                                        # (N,)
    sorted_idx = idx[order]
    counts = jnp.bincount(idx, length=M).astype(jnp.int32)          # (M,)
    tiles_per_model = (counts + tile - 1) // tile
    padded_counts = tiles_per_model * tile
    padded_starts = jnp.concatenate(
        [jnp.zeros((1,), jnp.int32),
         jnp.cumsum(padded_counts)[:-1].astype(jnp.int32)])
    sorted_starts = jnp.concatenate(
        [jnp.zeros((1,), jnp.int32),
         jnp.cumsum(counts)[:-1].astype(jnp.int32)])
    rank = jnp.arange(N, dtype=jnp.int32) - sorted_starts[sorted_idx]
    dest = padded_starts[sorted_idx] + rank      # row of each point in grouped buf

    max_tiles = N // tile + M                    # static bound on used tiles
    max_rows = max_tiles * tile

    # Input padded to 8 lanes so the kernel never lane-slices it.
    x_grp = (jnp.zeros((max_rows, C_PAD), jnp.bfloat16)
             .at[dest, :C].set(x[order].astype(jnp.bfloat16)))

    # Per-tile sub-model id + number of used tiles (SMEM scalar prefetch).
    used_tile_ends = jnp.cumsum(tiles_per_model).astype(jnp.int32)  # (M,)
    num_used = used_tile_ends[-1:]                                  # (1,) int32
    tile_model = jnp.searchsorted(
        used_tile_ends, jnp.arange(max_tiles, dtype=jnp.int32), side="right")
    tile_model = jnp.minimum(tile_model, M - 1).astype(jnp.int32)

    flops = 2 * max_rows * (C_PAD * W + W * W + K_VIEW * W + 2 * W * OUT_LANES)
    bytes_accessed = (max_rows * C_PAD * 2            # bf16 points in
                      + max_tiles * RTOT * 128 * 2    # bf16 weight slab per tile (upper bound)
                      + max_rows * OUT_LANES * 4)     # f32 lane-dense output

    out_grp = pl.pallas_call(
        _kilonerf_kernel,
        out_shape=jax.ShapeDtypeStruct((max_rows, OUT_LANES), jnp.float32),
        grid_spec=pltpu.PrefetchScalarGridSpec(
            num_scalar_prefetch=2,
            grid=(max_tiles,),
            in_specs=[
                pl.BlockSpec((tile, C_PAD), lambda t, tm, nu: (t, 0)),           # points
                pl.BlockSpec((None, RTOT, 128), lambda t, tm, nu: (tm[t], 0, 0)),  # weights
            ],
            out_specs=pl.BlockSpec((tile, OUT_LANES), lambda t, tm, nu: (t, 0)),
        ),
        compiler_params=pltpu.CompilerParams(
            dimension_semantics=("parallel",)),
        cost_estimate=pl.CostEstimate(
            flops=flops, transcendentals=0, bytes_accessed=bytes_accessed),
    )(tile_model, num_used, x_grp, wpack)

    # Back to the original point order; lanes 0:4 are [rgb, sigma].
    # (Padded / dead-tile rows are never gathered, so their garbage is benign.)
    point_rows = jnp.zeros((N,), jnp.int32).at[order].set(dest)
    return out_grp[point_rows, :4]


def init_params(key, num_models):
    """Deterministic kaiming-uniform-like init (a=sqrt(5) => bound=1/sqrt(fan_in))."""
    ks = iter(jax.random.split(key, 16))

    def kaiming_t(shape_out_in):
        # torch stores (M, out, in); init with fan_in = in; return transposed (M, in, out)
        m, out_d, in_d = shape_out_in
        bound = 1.0 / np.sqrt(in_d)
        w = jax.random.uniform(next(ks), (m, out_d, in_d), jnp.float32, -bound, bound)
        return jnp.transpose(w, (0, 2, 1))

    def bias(dim):
        # torch leaves biases uninitialized (torch.empty); use a deterministic
        # small uniform here.  Parity vs a real checkpoint requires loading biases.
        return jax.random.uniform(next(ks), (num_models, 1, dim), jnp.float32, -0.1, 0.1)

    p = {}
    p["w0_t"] = kaiming_t((num_models, W, INPUT_CH))
    p["b0"] = bias(W)
    p["w1_t"] = kaiming_t((num_models, W, W))
    p["b1"] = bias(W)
    p["wf_t"] = kaiming_t((num_models, W, W))
    p["bf"] = bias(W)
    p["ws_t"] = kaiming_t((num_models, 1, W))
    p["bs"] = bias(1)
    wv_t = kaiming_t((num_models, W, W + INPUT_CH_VIEWS))   # (M, W+3, W)
    p["wv_feat_t"] = wv_t[:, :W, :]
    p["wv_view_t"] = wv_t[:, W:, :]
    p["bv"] = bias(W)
    p["wr_t"] = kaiming_t((num_models, 3, W))
    p["br"] = bias(3)
    return p


def pack_params(p):
    """Pack all per-model weights/biases into a single (M, RTOT, 128) bf16 slab.

    Applies the algebraic fusions (in f32, then one bf16 cast):
      * feature_linear folded into the view layer: Wfv = Wf @ Wv_feat,
        bv' = bf @ Wv_feat + bv  (no ReLU after feature in the reference).
      * the two view-layer dots merged into one (40, 32) block over [h | x]
        with zero rows for the pts/pad channels.
    """
    M = p["w0_t"].shape[0]

    wfv = jnp.einsum("mij,mjk->mik", p["wf_t"], p["wv_feat_t"])              # (M, 32, 32)
    bv_fused = jnp.einsum("mij,mjk->mik", p["bf"], p["wv_feat_t"]) + p["bv"]  # (M, 1, 32)

    pack = jnp.zeros((M, RTOT, 128), jnp.float32)
    # layer 0: x(8) -> 32; rows 0:3 = pts weights, rows 3:8 zero (views + pad)
    pack = pack.at[:, ROW_W0:ROW_W0 + INPUT_CH, :W].set(p["w0_t"])
    # layer 1
    pack = pack.at[:, ROW_W1:ROW_W1 + W, :W].set(p["w1_t"])
    # merged feature+view layer over [h(32) | pts(3) | views(3) | pad(2)]
    pack = pack.at[:, ROW_WV:ROW_WV + W, :W].set(wfv)
    pack = pack.at[:, ROW_WV + W + INPUT_CH:ROW_WV + W + INPUT_CH + INPUT_CH_VIEWS,
                   :W].set(p["wv_view_t"])
    # fused rgb+sigma head: lhs = [hv | h]  ->  output lanes [rgb(0:3), sigma(3)]
    pack = pack.at[:, ROW_WFIN:ROW_WFIN + W, 0:3].set(p["wr_t"])
    pack = pack.at[:, ROW_WFIN + W:ROW_WFIN + 2 * W, 3:4].set(p["ws_t"])
    # biases
    pack = pack.at[:, ROW_BIAS + 0, :W].set(p["b0"][:, 0, :])
    pack = pack.at[:, ROW_BIAS + 1, :W].set(p["b1"][:, 0, :])
    pack = pack.at[:, ROW_BIAS + 2, :W].set(bv_fused[:, 0, :])
    pack = pack.at[:, ROW_BIAS + 3, 0:3].set(p["br"][:, 0, :])
    pack = pack.at[:, ROW_BIAS + 3, 3:4].set(p["bs"][:, 0, :])
    return pack.astype(jnp.bfloat16)


def reference_forward(x, idx, p):
    """Pure-JAX f32 reference mirroring the PyTorch forward (gather + bmm)."""
    pts, views = x[:, :INPUT_CH], x[:, INPUT_CH:]

    def lin(h, wt, b):
        return jnp.einsum("ni,nio->no", h, wt[idx]) + b[idx, 0]

    h = jax.nn.relu(lin(pts, p["w0_t"], p["b0"]))
    h = jax.nn.relu(lin(h, p["w1_t"], p["b1"]))
    sigma = lin(h, p["ws_t"], p["bs"])
    feature = lin(h, p["wf_t"], p["bf"])
    hcat = jnp.concatenate([feature, views], axis=-1)
    wv_t = jnp.concatenate([p["wv_feat_t"], p["wv_view_t"]], axis=1)
    hv = jax.nn.relu(lin(hcat, wv_t, p["bv"]))
    rgb = lin(hv, p["wr_t"], p["br"])
    return jnp.concatenate([rgb, sigma], axis=-1)


if __name__ == "__main__":
    key = jax.random.PRNGKey(0)
    k_param, k_x, k_idx = jax.random.split(key, 3)

    num_models = 4
    n_points = 1000   # not a tile multiple; exercises per-group padding + dead-tile gating

    params = init_params(k_param, num_models)
    wpack = pack_params(params)
    x = jax.random.normal(k_x, (n_points, INPUT_CH + INPUT_CH_VIEWS), jnp.float32)
    model_indices = jax.random.randint(k_idx, (n_points,), 0, num_models, jnp.int32)

    # Small demo batch -> tile=256; for production point counts sweep 1024-2048.
    fwd = jax.jit(functools.partial(batched_kilonerf_forward, tile=256))
    out = jax.block_until_ready(fwd(x, model_indices, wpack))

    ref = reference_forward(x, model_indices, params)
    # bf16 matmuls with f32 accumulation vs f32 reference.
    np.testing.assert_allclose(np.asarray(out), np.asarray(ref), rtol=3e-2, atol=3e-2)

    print("KERNEL_OK")
</pallas_src>

<mosaic_0001>
module attributes {stable_mosaic.version = 11 : i64} {
  func.func private @main(%arg0: i32) attributes {dimension_semantics = [#tpu.dimension_semantics<core_parallel>], iteration_bounds = array<i64: 2>, tpu.core_type = #tpu.core_type<sc_scalar_subcore>, window_params = []} {
    return
  }
}

module attributes {stable_mosaic.version = 11 : i64} {
  func.func private @main(%arg0: i32) attributes {dimension_semantics = [#tpu.dimension_semantics<core_parallel>], iteration_bounds = array<i64: 2>, tpu.core_type = #tpu.core_type<sc_scalar_subcore>, window_params = []} {
    return
  }
}

module attributes {stable_mosaic.version = 11 : i64} {
  func.func @_kilonerf_kernel(%arg0: i32, %arg1: memref<7xi32, #tpu.memory_space<smem>>, %arg2: memref<1xi32, #tpu.memory_space<smem>>, %arg3: memref<256x8xbf16, #tpu.memory_space<vmem>>, %arg4: memref<1x176x128xbf16, #tpu.memory_space<vmem>>, %arg5: memref<256x128xf32, #tpu.memory_space<vmem>>) attributes {dimension_semantics = [#tpu.dimension_semantics<parallel>], iteration_bounds = array<i64: 7>, scalar_prefetch = 2 : i64, scratch_operands = 0 : i64, tpu.core_type = #tpu.core_type<tc>, window_params = [{transform_indices = @transform_0, window_bounds = array<i64: 256, 8>}, {transform_indices = @transform_1, window_bounds = array<i64: 1, 176, 128>}, {transform_indices = @transform_2, window_bounds = array<i64: 256, 128>}]} {
    %c0 = arith.constant 0 : index
    %0 = memref.load %arg2[%c0] : memref<1xi32, #tpu.memory_space<smem>>
    %1 = arith.cmpi slt, %arg0, %0 : i32
    %2 = arith.extui %1 : i1 to i32
    %c0_i32 = arith.constant 0 : i32
    %3 = arith.cmpi ne, %2, %c0_i32 : i32
    scf.if %3 {
      %c0_0 = arith.constant 0 : index
      %c0_1 = arith.constant 0 : index
      %4 = vector.load %arg3[%c0_0, %c0_1] : memref<256x8xbf16, #tpu.memory_space<vmem>>, vector<256x8xbf16>
      %c0_2 = arith.constant 0 : index
      %c0_3 = arith.constant 0 : index
      %c0_4 = arith.constant 0 : index
      %5 = vector.load %arg4[%c0_2, %c0_3, %c0_4] : memref<1x176x128xbf16, #tpu.memory_space<vmem>>, vector<1x8x32xbf16>
      %6 = vector.shape_cast %5 : vector<1x8x32xbf16> to vector<8x32xbf16>
      %cst = arith.constant dense<0.000000e+00> : vector<256x32xf32>
      %7 = tpu.matmul %4, %6, %cst {dimension_numbers = #tpu.dot_dimension_numbers<[1], [0], [0], [1], [0, 0, 1, 1], [], []>} : vector<256x8xbf16>, vector<8x32xbf16>, vector<256x32xf32> -> vector<256x32xf32>
      %c0_5 = arith.constant 0 : index
      %c160 = arith.constant 160 : index
      %c0_6 = arith.constant 0 : index
      %8 = vector.load %arg4[%c0_5, %c160, %c0_6] : memref<1x176x128xbf16, #tpu.memory_space<vmem>>, vector<1x1x32xbf16>
      %9 = vector.shape_cast %8 : vector<1x1x32xbf16> to vector<1x32xbf16>
      %10 = arith.extf %9 : vector<1x32xbf16> to vector<1x32xf32>
      %11 = vector.broadcast %10 : vector<1x32xf32> to vector<256x32xf32>
      %12 = arith.addf %7, %11 : vector<256x32xf32>
      %cst_7 = arith.constant 0.000000e+00 : f32
      %13 = vector.broadcast %cst_7 : f32 to vector<256x32xf32>
      %14 = arith.maximumf %12, %13 : vector<256x32xf32>
      %15 = arith.truncf %14 : vector<256x32xf32> to vector<256x32xbf16>
      %c0_8 = arith.constant 0 : index
      %c16 = arith.constant 16 : index
      %c0_9 = arith.constant 0 : index
      %16 = vector.load %arg4[%c0_8, %c16, %c0_9] : memref<1x176x128xbf16, #tpu.memory_space<vmem>>, vector<1x32x32xbf16>
      %17 = vector.shape_cast %16 : vector<1x32x32xbf16> to vector<32x32xbf16>
      %cst_10 = arith.constant dense<0.000000e+00> : vector<256x32xf32>
      %18 = tpu.matmul %15, %17, %cst_10 {dimension_numbers = #tpu.dot_dimension_numbers<[1], [0], [0], [1], [0, 0, 1, 1], [], []>} : vector<256x32xbf16>, vector<32x32xbf16>, vector<256x32xf32> -> vector<256x32xf32>
      %c0_11 = arith.constant 0 : index
      %c161 = arith.constant 161 : index
      %c0_12 = arith.constant 0 : index
      %19 = vector.load %arg4[%c0_11, %c161, %c0_12] : memref<1x176x128xbf16, #tpu.memory_space<vmem>>, vector<1x1x32xbf16>
      %20 = vector.shape_cast %19 : vector<1x1x32xbf16> to vector<1x32xbf16>
      %21 = arith.extf %20 : vector<1x32xbf16> to vector<1x32xf32>
      %22 = vector.broadcast %21 : vector<1x32xf32> to vector<256x32xf32>
      %23 = arith.addf %18, %22 : vector<256x32xf32>
      %cst_13 = arith.constant 0.000000e+00 : f32
      %24 = vector.broadcast %cst_13 : f32 to vector<256x32xf32>
      %25 = arith.maximumf %23, %24 : vector<256x32xf32>
      %26 = arith.truncf %25 : vector<256x32xf32> to vector<256x32xbf16>
      %27 = tpu.concatenate %26, %4 in 1 : vector<256x32xbf16>, vector<256x8xbf16> -> vector<256x40xbf16>
      %c0_14 = arith.constant 0 : index
      %c48 = arith.constant 48 : index
      %c0_15 = arith.constant 0 : index
      %28 = vector.load %arg4[%c0_14, %c48, %c0_15] : memref<1x176x128xbf16, #tpu.memory_space<vmem>>, vector<1x40x32xbf16>
      %29 = vector.shape_cast %28 : vector<1x40x32xbf16> to vector<40x32xbf16>
      %cst_16 = arith.constant dense<0.000000e+00> : vector<256x32xf32>
      %30 = tpu.matmul %27, %29, %cst_16 {dimension_numbers = #tpu.dot_dimension_numbers<[1], [0], [0], [1], [0, 0, 1, 1], [], []>} : vector<256x40xbf16>, vector<40x32xbf16>, vector<256x32xf32> -> vector<256x32xf32>
      %c0_17 = arith.constant 0 : index
      %c162 = arith.constant 162 : index
      %c0_18 = arith.constant 0 : index
      %31 = vector.load %arg4[%c0_17, %c162, %c0_18] : memref<1x176x128xbf16, #tpu.memory_space<vmem>>, vector<1x1x32xbf16>
      %32 = vector.shape_cast %31 : vector<1x1x32xbf16> to vector<1x32xbf16>
      %33 = arith.extf %32 : vector<1x32xbf16> to vector<1x32xf32>
      %34 = vector.broadcast %33 : vector<1x32xf32> to vector<256x32xf32>
      %35 = arith.addf %30, %34 : vector<256x32xf32>
      %cst_19 = arith.constant 0.000000e+00 : f32
      %36 = vector.broadcast %cst_19 : f32 to vector<256x32xf32>
      %37 = arith.maximumf %35, %36 : vector<256x32xf32>
      %38 = arith.truncf %37 : vector<256x32xf32> to vector<256x32xbf16>
      %39 = tpu.concatenate %38, %26 in 1 : vector<256x32xbf16>, vector<256x32xbf16> -> vector<256x64xbf16>
      %c0_20 = arith.constant 0 : index
      %c96 = arith.constant 96 : index
      %c0_21 = arith.constant 0 : index
      %40 = vector.load %arg4[%c0_20, %c96, %c0_21] : memref<1x176x128xbf16, #tpu.memory_space<vmem>>, vector<1x64x128xbf16>
      %41 = vector.shape_cast %40 : vector<1x64x128xbf16> to vector<64x128xbf16>
      %cst_22 = arith.constant dense<0.000000e+00> : vector<256x128xf32>
      %42 = tpu.matmul %39, %41, %cst_22 {dimension_numbers = #tpu.dot_dimension_numbers<[1], [0], [0], [1], [0, 0, 1, 1], [], []>} : vector<256x64xbf16>, vector<64x128xbf16>, vector<256x128xf32> -> vector<256x128xf32>
      %c0_23 = arith.constant 0 : index
      %c163 = arith.constant 163 : index
      %c0_24 = arith.constant 0 : index
      %43 = vector.load %arg4[%c0_23, %c163, %c0_24] : memref<1x176x128xbf16, #tpu.memory_space<vmem>>, vector<1x1x128xbf16>
      %44 = vector.shape_cast %43 : vector<1x1x128xbf16> to vector<1x128xbf16>
      %45 = arith.extf %44 : vector<1x128xbf16> to vector<1x128xf32>
      %46 = vector.broadcast %45 : vector<1x128xf32> to vector<256x128xf32>
      %47 = arith.addf %42, %46 : vector<256x128xf32>
      %c0_25 = arith.constant 0 : index
      %c0_26 = arith.constant 0 : index
      %48 = vector.load %arg5[%c0_25, %c0_26] : memref<256x128xf32, #tpu.memory_space<vmem>>, vector<256x128xf32>
      tpu.vector_store %arg5[%c0_25, %c0_26], %47 {strides = array<i32>} : memref<256x128xf32, #tpu.memory_space<vmem>>, vector<256x128xf32>,
    } else {
    }
    return
  }
  func.func @transform_0(%arg0: i32, %arg1: memref<7xi32, #tpu.memory_space<smem>>, %arg2: memref<1xi32, #tpu.memory_space<smem>>) -> (i32, i32) {
    %c0_i32 = arith.constant 0 : i32
    %c0_i32_0 = arith.constant 0 : i32
    return %arg0, %c0_i32 : i32, i32
  }
  func.func @transform_1(%arg0: i32, %arg1: memref<7xi32, #tpu.memory_space<smem>>, %arg2: memref<1xi32, #tpu.memory_space<smem>>) -> (i32, i32, i32) {
    %0 = arith.index_cast %arg0 : i32 to index
    %1 = memref.load %arg1[%0] : memref<7xi32, #tpu.memory_space<smem>>
    %c0_i32 = arith.constant 0 : i32
    %c0_i32_0 = arith.constant 0 : i32
    %c0_i32_1 = arith.constant 0 : i32
    return %1, %c0_i32, %c0_i32_0 : i32, i32, i32
  }
  func.func @transform_2(%arg0: i32, %arg1: memref<7xi32, #tpu.memory_space<smem>>, %arg2: memref<1xi32, #tpu.memory_space<smem>>) -> (i32, i32) {
    %c0_i32 = arith.constant 0 : i32
    %c0_i32_0 = arith.constant 0 : i32
    return %arg0, %c0_i32 : i32, i32
  }
}

</mosaic_0001>

<llo_original>
// kernel: custom-call.8
$region0: #{custom-call.8}
  %s0 = inlined_call_operand.vmem [shape: u32[7], index: 0, kind: output, shape index: {}]

// kernel: batched_kilonerf_forward.1
$region0: #{batched_kilonerf_forward.1}
  #allocation0 [shape = 'u32[]', space=smem, size = 0x4, offset = 0x4, fixed_abs, tag = 'smem constant byte address 0x4 - core index']
  #allocation1 [shape = 'u32[144,128]{1,0:T(1,128)}', space=vmem, size = 0x12000, scoped, tag = 'internal scratch']
  #allocation2 [shape = 's32[1]{0}', space=sflag, size = 0x4, scoped, tag = 'scoped memory for batched_kilonerf_forward.1']
  #allocation3 [shape = 'u8[512]{0}', space=smem, size = 0x200, scoped, tag = 'prefetched SMEM operand 0']
  #allocation4 [shape = 's32[1]{0:T(128)S(6)}', space=smem, size = 0x200, scoped, tag = 'prefetched SMEM operand 1']
  %s0 = inlined_call_operand.vmem [shape: s32[7], index: 0, kind: input, shape index: {}]
  %s1 = inlined_call_operand.<no memory space> [shape: s32[1], index: 1, kind: input, shape index: {}]
  %s2 = inlined_call_operand.vmem [shape: bf16[1792,8], index: 2, kind: input, shape index: {}]
  %s3 = inlined_call_operand.vmem [shape: bf16[4,176,128], index: 3, kind: input, shape index: {}]
  %s4 = inlined_call_operand.vmem [shape: f32[1792,128], index: 4, kind: output, shape index: {}]
  %s5 = sld [smem:[#allocation0]]
  $region45: #{batched_kilonerf_forward.1} parent=0
    _
  %s7 = ssub.s32 1, %s5
  %s8 = scalar_select 0, %s7, %s5
  %s9 = sshll.u32 %s0, 4
  %s10 = int_to_ptr.vmem [resolvable:$true] %s9
  %12 = dma.vmem_to_smem %s10, 16, [#allocation3], [#allocation2]
  %13 = sst [smem:[#allocation4]] %s1
  %14 = dma.done [#allocation2], 16
  %15 = sfence
  loop: start=0, step=1, limit=9
  $region2: #{batched_kilonerf_forward.1} parent=0 // loop_pre_header
    _
  $region3: #{batched_kilonerf_forward.1} parent=0 // loop_header
    %s17 = sphi 0, %s21
    %p18 = scmp.ge.s32.totalorder %s17, 9
    %s27 = sphi 0, %s29
    %s30 = sphi 0, %s27
    %s31 = sphi 0, %s30
    %s47 = sphi 0, %s31
    %s55 = sphi 0, %s57
    %s58 = sphi 0, %s55
    %s59 = sphi 0, %s58
    %s75 = sphi 0, %s59
    %s81 = sphi 0, %s83
    %s84 = sphi 0, %s81
    %s85 = sphi 0, %s84
    %s101 = sphi 0, %s85
  $region4: #{batched_kilonerf_forward.1} parent=0 // loop_header_branch
    %20 = sbr.rel (%p18) target = $region8
  $region5: #{batched_kilonerf_forward.1} parent=0 // loop_body
    %s22 = ssub.s32 %s17, 1
    %s23 = ssub.s32 %s17, 2
    %s24 = sadd.s32 %s17, 1
    %s25 = ssub.s32 %s17, %s24
    %p26 = scmp.eq.s32.totalorder %s25, 0
    %s28 = sadd.s32 %s27, 1
    %s29 = scalar_select %p26, %s27, %s28
    %p32 = pneg %p26
    %p33 = scmp.eq.s32.totalorder %s17, 6
    %p34 = por %p32, %p33
    %p35 = scmp.ne.s32.totalorder %s27, %s30
    %p36 = scmp.eq.s32.totalorder %s17, 0
    %p37 = por %p35, %p36
    %p38 = scmp.ne.s32.totalorder %s27, %s30
    %p39 = scmp.eq.s32.totalorder %s22, 6
    %p40 = por %p38, %p39
    %p41 = scmp.ne.s32.totalorder %s30, %s31
    %p42 = scmp.eq.s32.totalorder %s22, 0
    %p43 = por %p41, %p42
    %p44 = scmp.ne.s32.totalorder %s30, %s31
    %p45 = scmp.eq.s32.totalorder %s23, 6
    %p46 = por %p44, %p45
    %p48 = scmp.ne.s32.totalorder %s31, %s47
    %p49 = scmp.eq.s32.totalorder %s23, 0
    %p50 = por %p48, %p49
    %s51 = sld [smem:[#allocation3 + %s17]]
    %s52 = sld [smem:[#allocation3 + %s24]]
    %s53 = ssub.s32 %s51, %s52
    %p54 = scmp.eq.s32.totalorder %s53, 0
    %s56 = sadd.s32 %s55, 1
    %s57 = scalar_select %p54, %s55, %s56
    %p60 = pneg %p54
    %p61 = scmp.eq.s32.totalorder %s17, 6
    %p62 = por %p60, %p61
    %p63 = scmp.ne.s32.totalorder %s55, %s58
    %p64 = scmp.eq.s32.totalorder %s17, 0
    %p65 = por %p63, %p64
    %p66 = scmp.ne.s32.totalorder %s55, %s58
    %p67 = scmp.eq.s32.totalorder %s22, 6
    %p68 = por %p66, %p67
    %p69 = scmp.ne.s32.totalorder %s58, %s59
    %p70 = scmp.eq.s32.totalorder %s22, 0
    %p71 = por %p69, %p70
    %p72 = scmp.ne.s32.totalorder %s58, %s59
    %p73 = scmp.eq.s32.totalorder %s23, 6
    %p74 = por %p72, %p73
    %p76 = scmp.ne.s32.totalorder %s59, %s75
    %p77 = scmp.eq.s32.totalorder %s23, 0
    %p78 = por %p76, %p77
    %s79 = ssub.s32 %s17, %s24
    %p80 = scmp.eq.s32.totalorder %s79, 0
    %s82 = sadd.s32 %s81, 1
    %s83 = scalar_select %p80, %s81, %s82
    %p86 = pneg %p80
    %p87 = scmp.eq.s32.totalorder %s17, 6
    %p88 = por %p86, %p87
    %p89 = scmp.ne.s32.totalorder %s81, %s84
    %p90 = scmp.eq.s32.totalorder %s17, 0
    %p91 = por %p89, %p90
    %p92 = scmp.ne.s32.totalorder %s81, %s84
    %p93 = scmp.eq.s32.totalorder %s22, 6
    %p94 = por %p92, %p93
    %p95 = scmp.ne.s32.totalorder %s84, %s85
    %p96 = scmp.eq.s32.totalorder %s22, 0
    %p97 = por %p95, %p96
    %p98 = scmp.ne.s32.totalorder %s84, %s85
    %p99 = scmp.eq.s32.totalorder %s23, 6
    %p100 = por %p98, %p99
    %p102 = scmp.ne.s32.totalorder %s85, %s101
    %p103 = scmp.eq.s32.totalorder %s23, 0
    %p104 = por %p102, %p103
    %p105 = scmp.le.s32.totalorder 1, %s17
    %p106 = scmp.lt.s32.totalorder %s17, 8
    %p107 = pnand %p105, %p106
    %p108 = pneg %p107
    // Predicated region
    $region9: #{batched_kilonerf_forward.1} parent=5 // pred_check
      _
    $region10: #{batched_kilonerf_forward.1} parent=5 // pred_check_branch
      %110 = sbr.rel (%p107) target = $region12
    $region11: #{batched_kilonerf_forward.1} parent=5 // pred_region
      %s111 = ssub.s32 %s17, 1
    $region12: #{batched_kilonerf_forward.1} parent=5 // pred_fallthru
      _
    %p112 = scmp.lt.s32.totalorder %s17, 7
    // Predicated region
    $region13: #{batched_kilonerf_forward.1} parent=5 // pred_check
      %p113 = pneg %p112
    $region14: #{batched_kilonerf_forward.1} parent=5 // pred_check_branch
      %115 = sbr.rel (%p113) target = $region16
    $region15: #{batched_kilonerf_forward.1} parent=5 // pred_region
      // Predicated region
      $region17: #{batched_kilonerf_forward.1} parent=15 // pred_check
        %p116 = pneg %p37
      $region18: #{batched_kilonerf_forward.1} parent=15 // pred_check_branch
        %118 = sbr.rel (%p116) target = $region20
      $region19: #{batched_kilonerf_forward.1} parent=15 // pred_region
        %s119 = smul.u32 32, %s17
        %p120 = scmp.lt.s32.totalorder %s119, 223
        %s121 = scalar_select %p120, %s119, 223
        %s122 = smul.addr %s121, 4
        %s123 = scalar_lea.vmem %s2, %s122
        %s124 = smul.u32 32, %s17
      $region20: #{batched_kilonerf_forward.1} parent=15 // pred_fallthru
        _
      // Predicated region
      $region21: #{batched_kilonerf_forward.1} parent=15 // pred_check
        %p125 = pneg %p65
      $region22: #{batched_kilonerf_forward.1} parent=15 // pred_check_branch
        %127 = sbr.rel (%p125) target = $region24
      $region23: #{batched_kilonerf_forward.1} parent=15 // pred_region
        %s128 = sld [smem:[#allocation3 + %s17]]
        %p129 = scmp.lt.s32.totalorder %s128, 3
        %s130 = scalar_select %p129, %s128, 3
        %s131 = smul.addr %s130, 22
        %s132 = smul.addr %s131, 4
        %s133 = scalar_lea.vmem %s3, %s132
        %s134 = sld [smem:[#allocation3 + %s17]]
      $region24: #{batched_kilonerf_forward.1} parent=15 // pred_fallthru
        _
    $region16: #{batched_kilonerf_forward.1} parent=5 // pred_fallthru
      _
    %p135 = scmp.le.s32.totalorder 1, %s17
    %p136 = scmp.lt.s32.totalorder %s17, 8
    %p137 = pnand %p135, %p136
    %p138 = pneg %p137
    // Predicated region
    $region25: #{batched_kilonerf_forward.1} parent=5 // pred_check
      _
    $region26: #{batched_kilonerf_forward.1} parent=5 // pred_check_branch
      %140 = sbr.rel (%p137) target = $region28
    $region27: #{batched_kilonerf_forward.1} parent=5 // pred_region
      %s141 = ssub.s32 %s17, 1
      %s142 = smul.u32 32, %s22
      %p143 = scmp.lt.s32.totalorder %s142, 223
      %s144 = scalar_select %p143, %s142, 223
      %s145 = smul.addr %s144, 4
      %s146 = scalar_lea.vmem %s2, %s145
      %p147 = pneg %p43
      %p148 = pneg %p40
      %s149 = sld [smem:[#allocation3 + %s22]]
      %p150 = scmp.lt.s32.totalorder %s149, 3
      %s151 = scalar_select %p150, %s149, 3
      %s152 = smul.addr %s151, 22
      %s153 = smul.addr %s152, 4
      %s154 = scalar_lea.vmem %s3, %s153
      %p155 = pneg %p71
      %p156 = pneg %p68
      %p157 = pneg %p97
      %p158 = pneg %p94
      %s159 = smul.u32 32, %s22
      %p160 = scmp.lt.s32.totalorder %s159, 223
      %s161 = scalar_select %p160, %s159, 223
      %s162 = smul.addr %s161, 8
      %s163 = scalar_lea.vmem %s4, %s162
      %s164 = smul.u32 32, %s22
      %p165 = scmp.lt.s32.totalorder %s164, 223
      %s166 = scalar_select %p165, %s164, 223
      %s167 = smul.addr %s166, 4
      %s168 = scalar_lea.vmem %s2, %s167
      %s169 = smul.u32 32, %s22
      %s170 = sld [smem:[#allocation3 + %s22]]
      %p171 = scmp.lt.s32.totalorder %s170, 3
      %s172 = scalar_select %p171, %s170, 3
      %s173 = smul.addr %s172, 22
      %s174 = smul.addr %s173, 4
      %s175 = scalar_lea.vmem %s3, %s174
      %s176 = sld [smem:[#allocation3 + %s22]]
      %s177 = smul.u32 32, %s22
      %p178 = scmp.lt.s32.totalorder %s177, 223
      %s179 = scalar_select %p178, %s177, 223
      %s180 = smul.addr %s179, 8
      %s181 = scalar_lea.vmem %s4, %s180
      %s182 = smul.u32 32, %s22
      %s184 = sld [smem:[#allocation4]]
      %p185 = scmp.lt.s32.totalorder %s22, %s184
      // Predicated region
      $region29: #{batched_kilonerf_forward.1} parent=27 // pred_check
        %p186 = pneg %p185
      $region30: #{batched_kilonerf_forward.1} parent=27 // pred_check_branch
        %188 = sbr.rel (%p186) target = $region32
      $region31: #{batched_kilonerf_forward.1} parent=27 // pred_region
        %v189 = vld [vmem:[%s168] sm:$0xf]
        %v190 = vld [vmem:[%s168 + $0x4] sm:$0xf]
        %v191 = vld [vmem:[%s168 + $0x8] sm:$0xf]
        %v192 = vld [vmem:[%s168 + $0xc] sm:$0xf]
        %v193 = vld [vmem:[%s168 + $0x10] sm:$0xf]
        %v194 = vld [vmem:[%s168 + $0x14] sm:$0xf]
        %v195 = vld [vmem:[%s168 + $0x18] sm:$0xf]
        %v196 = vld [vmem:[%s168 + $0x1c] sm:$0xf]
        %v197 = vld [vmem:[%s168 + $0x20] sm:$0xf]
        %v198 = vld [vmem:[%s168 + $0x24] sm:$0xf]
        %v199 = vld [vmem:[%s168 + $0x28] sm:$0xf]
        %v200 = vld [vmem:[%s168 + $0x2c] sm:$0xf]
        %v201 = vld [vmem:[%s168 + $0x30] sm:$0xf]
        %v202 = vld [vmem:[%s168 + $0x34] sm:$0xf]
        %v203 = vld [vmem:[%s168 + $0x38] sm:$0xf]
        %v204 = vld [vmem:[%s168 + $0x3c] sm:$0xf]
        %v205 = vld [vmem:[%s168 + $0x40] sm:$0xf]
        %v206 = vld [vmem:[%s168 + $0x44] sm:$0xf]
        %v207 = vld [vmem:[%s168 + $0x48] sm:$0xf]
        %v208 = vld [vmem:[%s168 + $0x4c] sm:$0xf]
        %v209 = vld [vmem:[%s168 + $0x50] sm:$0xf]
        %v210 = vld [vmem:[%s168 + $0x54] sm:$0xf]
        %v211 = vld [vmem:[%s168 + $0x58] sm:$0xf]
        %v212 = vld [vmem:[%s168 + $0x5c] sm:$0xf]
        %v213 = vld [vmem:[%s168 + $0x60] sm:$0xf]
        %v214 = vld [vmem:[%s168 + $0x64] sm:$0xf]
        %v215 = vld [vmem:[%s168 + $0x68] sm:$0xf]
        %v216 = vld [vmem:[%s168 + $0x6c] sm:$0xf]
        %v217 = vld [vmem:[%s168 + $0x70] sm:$0xf]
        %v218 = vld [vmem:[%s168 + $0x74] sm:$0xf]
        %v219 = vld [vmem:[%s168 + $0x78] sm:$0xf]
        %v220 = vld [vmem:[%s168 + $0x7c] sm:$0xf]
        %v221 = vld [vmem:[%s175] sm:$0xf]
        %v222 = vld [vmem:[%s175 + $0x50] sm:$0x1]
        %v223 = vunpack.c.l.bf16 %v222
        %v224 = vlaneseq
        %v225 = vshrl.u32 %v224, 7
        %v226 = vsub.s32 0, %v225
        %v227 = vrot.slane %v223, %v226
        %v260 = vunpack.c.l.b16 %v189
        %v261 = vunpack.c.l.b16 %v190
        %v262 = vunpack.c.l.b16 %v191
        %v263 = vunpack.c.l.b16 %v192
        %v264 = vunpack.c.l.b16 %v193
        %v265 = vunpack.c.l.b16 %v194
        %v266 = vunpack.c.l.b16 %v195
        %v267 = vunpack.c.l.b16 %v196
        %v268 = vunpack.c.l.b16 %v197
        %v269 = vunpack.c.l.b16 %v198
        %v270 = vunpack.c.l.b16 %v199
        %v271 = vunpack.c.l.b16 %v200
        %v272 = vunpack.c.l.b16 %v201
        %v273 = vunpack.c.l.b16 %v202
        %v274 = vunpack.c.l.b16 %v203
        %v275 = vunpack.c.l.b16 %v204
        %v276 = vunpack.c.l.b16 %v205
        %v277 = vunpack.c.l.b16 %v206
        %v278 = vunpack.c.l.b16 %v207
        %v279 = vunpack.c.l.b16 %v208
        %v280 = vunpack.c.l.b16 %v209
        %v281 = vunpack.c.l.b16 %v210
        %v282 = vunpack.c.l.b16 %v211
        %v283 = vunpack.c.l.b16 %v212
        %v284 = vunpack.c.l.b16 %v213
        %v285 = vunpack.c.l.b16 %v214
        %v286 = vunpack.c.l.b16 %v215
        %v287 = vunpack.c.l.b16 %v216
        %v288 = vunpack.c.l.b16 %v217
        %v289 = vunpack.c.l.b16 %v218
        %v290 = vunpack.c.l.b16 %v219
        %v291 = vunpack.c.l.b16 %v220
        %v292 = vpack.c.b16 %v261, %v260
        %v293 = vpack.c.b16 %v263, %v262
        %v294 = vpack.c.b16 %v265, %v264
        %v295 = vpack.c.b16 %v267, %v266
        %v296 = vpack.c.b16 %v269, %v268
        %v297 = vpack.c.b16 %v271, %v270
        %v298 = vpack.c.b16 %v273, %v272
        %v299 = vpack.c.b16 %v275, %v274
        %v300 = vpack.c.b16 %v277, %v276
        %v301 = vpack.c.b16 %v279, %v278
        %v302 = vpack.c.b16 %v281, %v280
        %v303 = vpack.c.b16 %v283, %v282
        %v304 = vpack.c.b16 %v285, %v284
        %v305 = vpack.c.b16 %v287, %v286
        %v306 = vpack.c.b16 %v289, %v288
        %v307 = vpack.c.b16 %v291, %v290
        %vm308 = vcmask 64512
        %v310 = vsel %vm308, %v292, 0
        %v313 = vsel %vm308, %v293, 0
        %v316 = vsel %vm308, %v294, 0
        %v319 = vsel %vm308, %v295, 0
        %v322 = vsel %vm308, %v296, 0
        %v325 = vsel %vm308, %v297, 0
        %v328 = vsel %vm308, %v298, 0
        %v331 = vsel %vm308, %v299, 0
        %v334 = vsel %vm308, %v300, 0
        %v337 = vsel %vm308, %v301, 0
        %v340 = vsel %vm308, %v302, 0
        %v343 = vsel %vm308, %v303, 0
        %v346 = vsel %vm308, %v304, 0
        %v349 = vsel %vm308, %v305, 0
        %v352 = vsel %vm308, %v306, 0
        %v355 = vsel %vm308, %v307, 0
        %vm357 = vcmask 1043456
        %v359 = vsel %vm357, %v221, 0
        %361 = vmatprep.subr.bf16.mxu0 0
        %362 = vmatpush1.bf16.msra.mxu0 0
        %363 = vmatprep.subr.bf16.mxu0 0
        %364 = vmatpush1.bf16.msra.mxu0 0
        %365 = vmatprep.subr.bf16.mxu0 0
        %366 = vmatpush1.bf16.msra.mxu0 0
        %367 = vmatprep.subr.bf16.mxu0 0
        %368 = vmatpush1.bf16.msra.mxu0 0
        %369 = vmatprep.subr.bf16.mxu0 0
        %370 = vmatpush1.bf16.msra.mxu0 0
        %371 = vmatprep.subr.bf16.mxu0 0
        %372 = vmatpush1.bf16.msra.mxu0 0
        %373 = vmatprep.subr.bf16.mxu0 0
        %374 = vmatpush1.bf16.msra.mxu0 0
        %375 = vmatprep.subr.bf16.mxu0 0
        %376 = vmatpush1.bf16.msra.mxu0 %v359
        %377 = vmatprep.subr.bf16.mxu0 0
        %378 = vmatpush2.bf16.msra.mxu0 0
        %379 = vmatprep.subr.bf16.mxu0 0
        %380 = vmatpush2.bf16.msra.mxu0 0
        %381 = vmatprep.subr.bf16.mxu0 0
        %382 = vmatpush2.bf16.msra.mxu0 0
        %383 = vmatprep.subr.bf16.mxu0 0
        %384 = vmatpush2.bf16.msra.mxu0 0
        %385 = vmatprep.subr.bf16.mxu0 0
        %386 = vmatpush2.bf16.msra.mxu0 0
        %387 = vmatprep.subr.bf16.mxu0 0
        %388 = vmatpush2.bf16.msra.mxu0 0
        %389 = vmatprep.subr.bf16.mxu0 0
        %390 = vmatpush2.bf16.msra.mxu0 0
        %391 = vmatprep.subr.bf16.mxu0 0
        %392 = vmatpush2.bf16.msra.mxu0 0
        %393 = vmatprep.mubr.bf16.mxu0 0
        %394 = vmatmul.mubr.bf16.gmra.mxu0 %v310
        %v395 = vpop.f32.mrf.mxu0
        %v396 = vadd.f32 %v227, %v395
        %v397 = vpop.f32.mrf.mxu0
        %v398 = vpop.f32.mrf.mxu0
        %v399 = vadd.f32 %v227, %v398
        %v400 = vpop.f32.mrf.mxu0
        %401 = vmatprep.mubr.bf16.mxu0 0
        %402 = vmatmul.mubr.bf16.gmra.mxu0 %v313
        %v403 = vpop.f32.mrf.mxu0
        %v404 = vadd.f32 %v227, %v403
        %v405 = vpop.f32.mrf.mxu0
        %v406 = vpop.f32.mrf.mxu0
        %v407 = vadd.f32 %v227, %v406
        %v408 = vpop.f32.mrf.mxu0
        %409 = vmatprep.mubr.bf16.mxu0 0
        %410 = vmatmul.mubr.bf16.gmra.mxu0 %v316
        %v411 = vpop.f32.mrf.mxu0
        %v412 = vadd.f32 %v227, %v411
        %v413 = vpop.f32.mrf.mxu0
        %v414 = vpop.f32.mrf.mxu0
        %v415 = vadd.f32 %v227, %v414
        %v416 = vpop.f32.mrf.mxu0
        %417 = vmatprep.mubr.bf16.mxu0 0
        %418 = vmatmul.mubr.bf16.gmra.mxu0 %v319
        %v419 = vpop.f32.mrf.mxu0
        %v420 = vadd.f32 %v227, %v419
        %v421 = vpop.f32.mrf.mxu0
        %v422 = vpop.f32.mrf.mxu0
        %v423 = vadd.f32 %v227, %v422
        %v424 = vpop.f32.mrf.mxu0
        %425 = vmatprep.mubr.bf16.mxu0 0
        %426 = vmatmul.mubr.bf16.gmra.mxu0 %v322
        %v427 = vpop.f32.mrf.mxu0
        %v428 = vadd.f32 %v227, %v427
        %v429 = vpop.f32.mrf.mxu0
        %v430 = vpop.f32.mrf.mxu0
        %v431 = vadd.f32 %v227, %v430
        %v432 = vpop.f32.mrf.mxu0
        %433 = vmatprep.mubr.bf16.mxu0 0
        %434 = vmatmul.mubr.bf16.gmra.mxu0 %v325
        %v435 = vpop.f32.mrf.mxu0
        %v436 = vadd.f32 %v227, %v435
        %v437 = vpop.f32.mrf.mxu0
        %v438 = vpop.f32.mrf.mxu0
        %v439 = vadd.f32 %v227, %v438
        %v440 = vpop.f32.mrf.mxu0
        %441 = vmatprep.mubr.bf16.mxu0 0
        %442 = vmatmul.mubr.bf16.gmra.mxu0 %v328
        %v443 = vpop.f32.mrf.mxu0
        %v444 = vadd.f32 %v227, %v443
        %v445 = vpop.f32.mrf.mxu0
        %v446 = vpop.f32.mrf.mxu0
        %v447 = vadd.f32 %v227, %v446
        %v448 = vpop.f32.mrf.mxu0
        %449 = vmatprep.mubr.bf16.mxu0 0
        %450 = vmatmul.mubr.bf16.gmra.mxu0 %v331
        %v451 = vpop.f32.mrf.mxu0
        %v452 = vadd.f32 %v227, %v451
        %v453 = vpop.f32.mrf.mxu0
        %v454 = vpop.f32.mrf.mxu0
        %v455 = vadd.f32 %v227, %v454
        %v456 = vpop.f32.mrf.mxu0
        %457 = vmatprep.mubr.bf16.mxu0 0
        %458 = vmatmul.mubr.bf16.gmra.mxu0 %v334
        %v459 = vpop.f32.mrf.mxu0
        %v460 = vadd.f32 %v227, %v459
        %v461 = vpop.f32.mrf.mxu0
        %v462 = vpop.f32.mrf.mxu0
        %v463 = vadd.f32 %v227, %v462
        %v464 = vpop.f32.mrf.mxu0
        %465 = vmatprep.mubr.bf16.mxu0 0
        %466 = vmatmul.mubr.bf16.gmra.mxu0 %v337
        %v467 = vpop.f32.mrf.mxu0
        %v468 = vadd.f32 %v227, %v467
        %v469 = vpop.f32.mrf.mxu0
        %v470 = vpop.f32.mrf.mxu0
        %v471 = vadd.f32 %v227, %v470
        %v472 = vpop.f32.mrf.mxu0
        %473 = vmatprep.mubr.bf16.mxu0 0
        %474 = vmatmul.mubr.bf16.gmra.mxu0 %v340
        %v475 = vpop.f32.mrf.mxu0
        %v476 = vadd.f32 %v227, %v475
        %v477 = vpop.f32.mrf.mxu0
        %v478 = vpop.f32.mrf.mxu0
        %v479 = vadd.f32 %v227, %v478
        %v480 = vpop.f32.mrf.mxu0
        %481 = vmatprep.mubr.bf16.mxu0 0
        %482 = vmatmul.mubr.bf16.gmra.mxu0 %v343
        %v483 = vpop.f32.mrf.mxu0
        %v484 = vadd.f32 %v227, %v483
        %v485 = vpop.f32.mrf.mxu0
        %v486 = vpop.f32.mrf.mxu0
        %v487 = vadd.f32 %v227, %v486
        %v488 = vpop.f32.mrf.mxu0
        %489 = vmatprep.mubr.bf16.mxu0 0
        %490 = vmatmul.mubr.bf16.gmra.mxu0 %v346
        %v491 = vpop.f32.mrf.mxu0
        %v492 = vadd.f32 %v227, %v491
        %v493 = vpop.f32.mrf.mxu0
        %v494 = vpop.f32.mrf.mxu0
        %v495 = vadd.f32 %v227, %v494
        %v496 = vpop.f32.mrf.mxu0
        %497 = vmatprep.mubr.bf16.mxu0 0
        %498 = vmatmul.mubr.bf16.gmra.mxu0 %v349
        %v499 = vpop.f32.mrf.mxu0
        %v500 = vadd.f32 %v227, %v499
        %v501 = vpop.f32.mrf.mxu0
        %v502 = vpop.f32.mrf.mxu0
        %v503 = vadd.f32 %v227, %v502
        %v504 = vpop.f32.mrf.mxu0
        %505 = vmatprep.mubr.bf16.mxu0 0
        %506 = vmatmul.mubr.bf16.gmra.mxu0 %v352
        %v507 = vpop.f32.mrf.mxu0
        %v508 = vadd.f32 %v227, %v507
        %v509 = vpop.f32.mrf.mxu0
        %v510 = vpop.f32.mrf.mxu0
        %v511 = vadd.f32 %v227, %v510
        %v512 = vpop.f32.mrf.mxu0
        %513 = vmatprep.mubr.bf16.mxu0 0
        %514 = vmatmul.mubr.bf16.gmra.mxu0 %v355
        %v515 = vpop.f32.mrf.mxu0
        %v516 = vadd.f32 %v227, %v515
        %v517 = vpop.f32.mrf.mxu0
        %v518 = vpop.f32.mrf.mxu0
        %v519 = vadd.f32 %v227, %v518
        %v520 = vpop.f32.mrf.mxu0
        %521 = vdwg.mxu0
        %v522 = vmax.f32 %v396, 0.0
        %v523 = vmax.f32 %v399, 0.0
        %v524 = vmax.f32 %v404, 0.0
        %v525 = vmax.f32 %v407, 0.0
        %v526 = vmax.f32 %v412, 0.0
        %v527 = vmax.f32 %v415, 0.0
        %v528 = vmax.f32 %v420, 0.0
        %v529 = vmax.f32 %v423, 0.0
        %v530 = vmax.f32 %v428, 0.0
        %v531 = vmax.f32 %v431, 0.0
        %v532 = vmax.f32 %v436, 0.0
        %v533 = vmax.f32 %v439, 0.0
        %v534 = vmax.f32 %v444, 0.0
        %v535 = vmax.f32 %v447, 0.0
        %v536 = vmax.f32 %v452, 0.0
        %v537 = vmax.f32 %v455, 0.0
        %v538 = vmax.f32 %v460, 0.0
        %v539 = vmax.f32 %v463, 0.0
        %v540 = vmax.f32 %v468, 0.0
        %v541 = vmax.f32 %v471, 0.0
        %v542 = vmax.f32 %v476, 0.0
        %v543 = vmax.f32 %v479, 0.0
        %v544 = vmax.f32 %v484, 0.0
        %v545 = vmax.f32 %v487, 0.0
        %v546 = vmax.f32 %v492, 0.0
        %v547 = vmax.f32 %v495, 0.0
        %v548 = vmax.f32 %v500, 0.0
        %v549 = vmax.f32 %v503, 0.0
        %v550 = vmax.f32 %v508, 0.0
        %v551 = vmax.f32 %v511, 0.0
        %v552 = vmax.f32 %v516, 0.0
        %v553 = vmax.f32 %v519, 0.0
        %v554 = vpack.c.bf16 %v523, %v522
        %v555 = vpack.c.bf16 %v525, %v524
        %v556 = vpack.c.bf16 %v527, %v526
        %v557 = vpack.c.bf16 %v529, %v528
        %v558 = vpack.c.bf16 %v531, %v530
        %v559 = vpack.c.bf16 %v533, %v532
        %v560 = vpack.c.bf16 %v535, %v534
        %v561 = vpack.c.bf16 %v537, %v536
        %v562 = vpack.c.bf16 %v539, %v538
        %v563 = vpack.c.bf16 %v541, %v540
        %v564 = vpack.c.bf16 %v543, %v542
        %v565 = vpack.c.bf16 %v545, %v544
        %v566 = vpack.c.bf16 %v547, %v546
        %v567 = vpack.c.bf16 %v549, %v548
        %v568 = vpack.c.bf16 %v551, %v550
        %v569 = vpack.c.bf16 %v553, %v552
        %v570 = vld [vmem:[%s175 + $0x8] sm:$0xf]
        %v571 = vld [vmem:[%s175 + $0xc] sm:$0xf]
        %v572 = vld [vmem:[%s175 + $0x10] sm:$0xf]
        %v573 = vld [vmem:[%s175 + $0x14] sm:$0xf]
        %v574 = vlaneseq
        %v575 = vshrl.u32 %v574, 7
        %v576 = vsub.s32 1, %v575
        %v577 = vrot.slane %v223, %v576
        %v582 = vunpack.c.l.b16 %v570
        %v583 = vunpack.c.l.b16 %v571
        %v584 = vunpack.c.l.b16 %v572
        %v585 = vunpack.c.l.b16 %v573
        %v586 = vpack.c.b16 %v583, %v582
        %v587 = vpack.c.b16 %v585, %v584
        %vm590 = vcmask 261120
        %v592 = vsel %vm590, %v554, 0
        %v595 = vsel %vm590, %v555, 0
        %v598 = vsel %vm590, %v556, 0
        %v601 = vsel %vm590, %v557, 0
        %v604 = vsel %vm590, %v558, 0
        %v607 = vsel %vm590, %v559, 0
        %v610 = vsel %vm590, %v560, 0
        %v613 = vsel %vm590, %v561, 0
        %v616 = vsel %vm590, %v562, 0
        %v619 = vsel %vm590, %v563, 0
        %v622 = vsel %vm590, %v564, 0
        %v625 = vsel %vm590, %v565, 0
        %v628 = vsel %vm590, %v566, 0
        %v631 = vsel %vm590, %v567, 0
        %v634 = vsel %vm590, %v568, 0
        %v637 = vsel %vm590, %v569, 0
        %639 = vmatprep.subr.bf16.mxu0 0
        %640 = vmatpush1.bf16.msra.mxu0 0
        %641 = vmatprep.subr.bf16.mxu0 0
        %642 = vmatpush1.bf16.msra.mxu0 0
        %643 = vmatprep.subr.bf16.mxu0 0
        %644 = vmatpush1.bf16.msra.mxu0 0
        %645 = vmatprep.subr.bf16.mxu0 0
        %646 = vmatpush1.bf16.msra.mxu0 0
        %647 = vmatprep.subr.bf16.mxu0 0
        %648 = vmatpush1.bf16.msra.mxu0 0
        %649 = vmatprep.subr.bf16.mxu0 0
        %650 = vmatpush1.bf16.msra.mxu0 0
        %651 = vmatprep.subr.bf16.mxu0 0
        %652 = vmatpush1.bf16.msra.mxu0 %v587
        %653 = vmatprep.subr.bf16.mxu0 0
        %654 = vmatpush1.bf16.msra.mxu0 %v586
        %655 = vmatprep.subr.bf16.mxu0 0
        %656 = vmatpush2.bf16.msra.mxu0 0
        %657 = vmatprep.subr.bf16.mxu0 0
        %658 = vmatpush2.bf16.msra.mxu0 0
        %659 = vmatprep.subr.bf16.mxu0 0
        %660 = vmatpush2.bf16.msra.mxu0 0
        %661 = vmatprep.subr.bf16.mxu0 0
        %662 = vmatpush2.bf16.msra.mxu0 0
        %663 = vmatprep.subr.bf16.mxu0 0
        %664 = vmatpush2.bf16.msra.mxu0 0
        %665 = vmatprep.subr.bf16.mxu0 0
        %666 = vmatpush2.bf16.msra.mxu0 0
        %667 = vmatprep.subr.bf16.mxu0 0
        %668 = vmatpush2.bf16.msra.mxu0 0
        %669 = vmatprep.subr.bf16.mxu0 0
        %670 = vmatpush2.bf16.msra.mxu0 0
        %671 = vmatprep.mubr.bf16.mxu0 0
        %672 = vmatmul.mubr.bf16.gmra.mxu0 %v592
        %v673 = vpop.f32.mrf.mxu0
        %v674 = vadd.f32 %v577, %v673
        %v675 = vpop.f32.mrf.mxu0
        %v676 = vpop.f32.mrf.mxu0
        %v677 = vadd.f32 %v577, %v676
        %v678 = vpop.f32.mrf.mxu0
        %679 = vmatprep.mubr.bf16.mxu0 0
        %680 = vmatmul.mubr.bf16.gmra.mxu0 %v595
        %v681 = vpop.f32.mrf.mxu0
        %v682 = vadd.f32 %v577, %v681
        %v683 = vpop.f32.mrf.mxu0
        %v684 = vpop.f32.mrf.mxu0
        %v685 = vadd.f32 %v577, %v684
        %v686 = vpop.f32.mrf.mxu0
        %687 = vmatprep.mubr.bf16.mxu0 0
        %688 = vmatmul.mubr.bf16.gmra.mxu0 %v598
        %v689 = vpop.f32.mrf.mxu0
        %v690 = vadd.f32 %v577, %v689
        %v691 = vpop.f32.mrf.mxu0
        %v692 = vpop.f32.mrf.mxu0
        %v693 = vadd.f32 %v577, %v692
        %v694 = vpop.f32.mrf.mxu0
        %695 = vmatprep.mubr.bf16.mxu0 0
        %696 = vmatmul.mubr.bf16.gmra.mxu0 %v601
        %v697 = vpop.f32.mrf.mxu0
        %v698 = vadd.f32 %v577, %v697
        %v699 = vpop.f32.mrf.mxu0
        %v700 = vpop.f32.mrf.mxu0
        %v701 = vadd.f32 %v577, %v700
        %v702 = vpop.f32.mrf.mxu0
        %703 = vmatprep.mubr.bf16.mxu0 0
        %704 = vmatmul.mubr.bf16.gmra.mxu0 %v604
        %v705 = vpop.f32.mrf.mxu0
        %v706 = vadd.f32 %v577, %v705
        %v707 = vpop.f32.mrf.mxu0
        %v708 = vpop.f32.mrf.mxu0
        %v709 = vadd.f32 %v577, %v708
        %v710 = vpop.f32.mrf.mxu0
        %711 = vmatprep.mubr.bf16.mxu0 0
        %712 = vmatmul.mubr.bf16.gmra.mxu0 %v607
        %v713 = vpop.f32.mrf.mxu0
        %v714 = vadd.f32 %v577, %v713
        %v715 = vpop.f32.mrf.mxu0
        %v716 = vpop.f32.mrf.mxu0
        %v717 = vadd.f32 %v577, %v716
        %v718 = vpop.f32.mrf.mxu0
        %719 = vmatprep.mubr.bf16.mxu0 0
        %720 = vmatmul.mubr.bf16.gmra.mxu0 %v610
        %v721 = vpop.f32.mrf.mxu0
        %v722 = vadd.f32 %v577, %v721
        %v723 = vpop.f32.mrf.mxu0
        %v724 = vpop.f32.mrf.mxu0
        %v725 = vadd.f32 %v577, %v724
        %v726 = vpop.f32.mrf.mxu0
        %727 = vmatprep.mubr.bf16.mxu0 0
        %728 = vmatmul.mubr.bf16.gmra.mxu0 %v613
        %v729 = vpop.f32.mrf.mxu0
        %v730 = vadd.f32 %v577, %v729
        %v731 = vpop.f32.mrf.mxu0
        %v732 = vpop.f32.mrf.mxu0
        %v733 = vadd.f32 %v577, %v732
        %v734 = vpop.f32.mrf.mxu0
        %735 = vmatprep.mubr.bf16.mxu0 0
        %736 = vmatmul.mubr.bf16.gmra.mxu0 %v616
        %v737 = vpop.f32.mrf.mxu0
        %v738 = vadd.f32 %v577, %v737
        %v739 = vpop.f32.mrf.mxu0
        %v740 = vpop.f32.mrf.mxu0
        %v741 = vadd.f32 %v577, %v740
        %v742 = vpop.f32.mrf.mxu0
        %743 = vmatprep.mubr.bf16.mxu0 0
        %744 = vmatmul.mubr.bf16.gmra.mxu0 %v619
        %v745 = vpop.f32.mrf.mxu0
        %v746 = vadd.f32 %v577, %v745
        %v747 = vpop.f32.mrf.mxu0
        %v748 = vpop.f32.mrf.mxu0
        %v749 = vadd.f32 %v577, %v748
        %v750 = vpop.f32.mrf.mxu0
        %751 = vmatprep.mubr.bf16.mxu0 0
        %752 = vmatmul.mubr.bf16.gmra.mxu0 %v622
        %v753 = vpop.f32.mrf.mxu0
        %v754 = vadd.f32 %v577, %v753
        %v755 = vpop.f32.mrf.mxu0
        %v756 = vpop.f32.mrf.mxu0
        %v757 = vadd.f32 %v577, %v756
        %v758 = vpop.f32.mrf.mxu0
        %759 = vmatprep.mubr.bf16.mxu0 0
        %760 = vmatmul.mubr.bf16.gmra.mxu0 %v625
        %v761 = vpop.f32.mrf.mxu0
        %v762 = vadd.f32 %v577, %v761
        %v763 = vpop.f32.mrf.mxu0
        %v764 = vpop.f32.mrf.mxu0
        %v765 = vadd.f32 %v577, %v764
        %v766 = vpop.f32.mrf.mxu0
        %767 = vmatprep.mubr.bf16.mxu0 0
        %768 = vmatmul.mubr.bf16.gmra.mxu0 %v628
        %v769 = vpop.f32.mrf.mxu0
        %v770 = vadd.f32 %v577, %v769
        %v771 = vpop.f32.mrf.mxu0
        %v772 = vpop.f32.mrf.mxu0
        %v773 = vadd.f32 %v577, %v772
        %v774 = vpop.f32.mrf.mxu0
        %775 = vmatprep.mubr.bf16.mxu0 0
        %776 = vmatmul.mubr.bf16.gmra.mxu0 %v631
        %v777 = vpop.f32.mrf.mxu0
        %v778 = vadd.f32 %v577, %v777
        %v779 = vpop.f32.mrf.mxu0
        %v780 = vpop.f32.mrf.mxu0
        %v781 = vadd.f32 %v577, %v780
        %v782 = vpop.f32.mrf.mxu0
        %783 = vmatprep.mubr.bf16.mxu0 0
        %784 = vmatmul.mubr.bf16.gmra.mxu0 %v634
        %v785 = vpop.f32.mrf.mxu0
        %v786 = vadd.f32 %v577, %v785
        %v787 = vpop.f32.mrf.mxu0
        %v788 = vpop.f32.mrf.mxu0
        %v789 = vadd.f32 %v577, %v788
        %v790 = vpop.f32.mrf.mxu0
        %791 = vmatprep.mubr.bf16.mxu0 0
        %792 = vmatmul.mubr.bf16.gmra.mxu0 %v637
        %v793 = vpop.f32.mrf.mxu0
        %v794 = vadd.f32 %v577, %v793
        %v795 = vpop.f32.mrf.mxu0
        %v796 = vpop.f32.mrf.mxu0
        %v797 = vadd.f32 %v577, %v796
        %v798 = vpop.f32.mrf.mxu0
        %799 = vdwg.mxu0
        %v800 = vmax.f32 %v674, 0.0
        %v801 = vmax.f32 %v677, 0.0
        %v802 = vmax.f32 %v682, 0.0
        %v803 = vmax.f32 %v685, 0.0
        %v804 = vmax.f32 %v690, 0.0
        %v805 = vmax.f32 %v693, 0.0
        %v806 = vmax.f32 %v698, 0.0
        %v807 = vmax.f32 %v701, 0.0
        %v808 = vmax.f32 %v706, 0.0
        %v809 = vmax.f32 %v709, 0.0
        %v810 = vmax.f32 %v714, 0.0
        %v811 = vmax.f32 %v717, 0.0
        %v812 = vmax.f32 %v722, 0.0
        %v813 = vmax.f32 %v725, 0.0
        %v814 = vmax.f32 %v730, 0.0
        %v815 = vmax.f32 %v733, 0.0
        %v816 = vmax.f32 %v738, 0.0
        %v817 = vmax.f32 %v741, 0.0
        %v818 = vmax.f32 %v746, 0.0
        %v819 = vmax.f32 %v749, 0.0
        %v820 = vmax.f32 %v754, 0.0
        %v821 = vmax.f32 %v757, 0.0
        %v822 = vmax.f32 %v762, 0.0
        %v823 = vmax.f32 %v765, 0.0
        %v824 = vmax.f32 %v770, 0.0
        %v825 = vmax.f32 %v773, 0.0
        %v826 = vmax.f32 %v778, 0.0
        %v827 = vmax.f32 %v781, 0.0
        %v828 = vmax.f32 %v786, 0.0
        %v829 = vmax.f32 %v789, 0.0
        %v830 = vmax.f32 %v794, 0.0
        %v831 = vmax.f32 %v797, 0.0
        %v832 = vpack.c.bf16 %v801, %v800
        %v833 = vpack.c.bf16 %v803, %v802
        %v834 = vpack.c.bf16 %v805, %v804
        %v835 = vpack.c.bf16 %v807, %v806
        %v836 = vpack.c.bf16 %v809, %v808
        %v837 = vpack.c.bf16 %v811, %v810
        %v838 = vpack.c.bf16 %v813, %v812
        %v839 = vpack.c.bf16 %v815, %v814
        %v840 = vpack.c.bf16 %v817, %v816
        %v841 = vpack.c.bf16 %v819, %v818
        %v842 = vpack.c.bf16 %v821, %v820
        %v843 = vpack.c.bf16 %v823, %v822
        %v844 = vpack.c.bf16 %v825, %v824
        %v845 = vpack.c.bf16 %v827, %v826
        %v846 = vpack.c.bf16 %v829, %v828
        %v847 = vpack.c.bf16 %v831, %v830
        %848 = vrot.lane.b32.xlu0 %v292, 32
        %v849 = vpop.permute.xlu0 %848
        %850 = vrot.lane.b32.xlu0 %v293, 32
        %v851 = vpop.permute.xlu0 %850
        %852 = vrot.lane.b32.xlu0 %v294, 32
        %v853 = vpop.permute.xlu0 %852
        %854 = vrot.lane.b32.xlu0 %v295, 32
        %v855 = vpop.permute.xlu0 %854
        %856 = vrot.lane.b32.xlu0 %v296, 32
        %v857 = vpop.permute.xlu0 %856
        %858 = vrot.lane.b32.xlu0 %v297, 32
        %v859 = vpop.permute.xlu0 %858
        %860 = vrot.lane.b32.xlu0 %v298, 32
        %v861 = vpop.permute.xlu0 %860
        %862 = vrot.lane.b32.xlu0 %v299, 32
        %v863 = vpop.permute.xlu0 %862
        %864 = vrot.lane.b32.xlu0 %v300, 32
        %v865 = vpop.permute.xlu0 %864
        %866 = vrot.lane.b32.xlu0 %v301, 32
        %v867 = vpop.permute.xlu0 %866
        %868 = vrot.lane.b32.xlu0 %v302, 32
        %v869 = vpop.permute.xlu0 %868
        %870 = vrot.lane.b32.xlu0 %v303, 32
        %v871 = vpop.permute.xlu0 %870
        %872 = vrot.lane.b32.xlu0 %v304, 32
        %v873 = vpop.permute.xlu0 %872
        %874 = vrot.lane.b32.xlu0 %v305, 32
        %v875 = vpop.permute.xlu0 %874
        %876 = vrot.lane.b32.xlu0 %v306, 32
        %v877 = vpop.permute.xlu0 %876
        %878 = vrot.lane.b32.xlu0 %v307, 32
        %v879 = vpop.permute.xlu0 %878
        %v882 = vsel %vm590, %v832, %v849
        %v885 = vsel %vm590, %v833, %v851
        %v888 = vsel %vm590, %v834, %v853
        %v891 = vsel %vm590, %v835, %v855
        %v894 = vsel %vm590, %v836, %v857
        %v897 = vsel %vm590, %v837, %v859
        %v900 = vsel %vm590, %v838, %v861
        %v903 = vsel %vm590, %v839, %v863
        %v906 = vsel %vm590, %v840, %v865
        %v909 = vsel %vm590, %v841, %v867
        %v912 = vsel %vm590, %v842, %v869
        %v915 = vsel %vm590, %v843, %v871
        %v918 = vsel %vm590, %v844, %v873
        %v921 = vsel %vm590, %v845, %v875
        %v924 = vsel %vm590, %v846, %v877
        %v927 = vsel %vm590, %v847, %v879
        %v928 = vld [vmem:[%s175 + $0x18] sm:$0xf]
        %v929 = vld [vmem:[%s175 + $0x1c] sm:$0xf]
        %v930 = vld [vmem:[%s175 + $0x20] sm:$0xf]
        %v931 = vld [vmem:[%s175 + $0x24] sm:$0xf]
        %v932 = vld [vmem:[%s175 + $0x28] sm:$0xf]
        %v933 = vld [vmem:[%s175 + $0x50] sm:$0x2]
        %v934 = vunpack.c.l.bf16 %v933
        %v935 = vlaneseq
        %v936 = vshrl.u32 %v935, 7
        %v937 = vsub.s32 2, %v936
        %v938 = vrot.slane %v934, %v937
        %v944 = vunpack.c.l.b16 %v928
        %v945 = vunpack.c.l.b16 %v929
        %v946 = vunpack.c.l.b16 %v930
        %v947 = vunpack.c.l.b16 %v931
        %v948 = vunpack.c.l.b16 %v932
        %v949 = vpack.c.b16 %v945, %v944
        %v950 = vpack.c.b16 %v947, %v946
        %v951 = vpack.c.b16 %v948, %v948
        %vm954 = vcmask 326656
        %v955 = vsel %vm954, %v882, 0
        %v957 = vsel %vm954, %v885, 0
        %v959 = vsel %vm954, %v888, 0
        %v961 = vsel %vm954, %v891, 0
        %v963 = vsel %vm954, %v894, 0
        %v965 = vsel %vm954, %v897, 0
        %v967 = vsel %vm954, %v900, 0
        %v969 = vsel %vm954, %v903, 0
        %v971 = vsel %vm954, %v906, 0
        %v973 = vsel %vm954, %v909, 0
        %v975 = vsel %vm954, %v912, 0
        %v977 = vsel %vm954, %v915, 0
        %v979 = vsel %vm954, %v918, 0
        %v981 = vsel %vm954, %v921, 0
        %v983 = vsel %vm954, %v924, 0
        %v985 = vsel %vm954, %v927, 0
        %v988 = vsel %vm357, %v951, 0
        %990 = vmatprep.subr.bf16.mxu0 0
        %991 = vmatpush1.bf16.msra.mxu0 0
        %992 = vmatprep.subr.bf16.mxu0 0
        %993 = vmatpush1.bf16.msra.mxu0 0
        %994 = vmatprep.subr.bf16.mxu0 0
        %995 = vmatpush1.bf16.msra.mxu0 0
        %996 = vmatprep.subr.bf16.mxu0 0
        %997 = vmatpush1.bf16.msra.mxu0 0
        %998 = vmatprep.subr.bf16.mxu0 0
        %999 = vmatpush1.bf16.msra.mxu0 0
        %1000 = vmatprep.subr.bf16.mxu0 0
        %1001 = vmatpush1.bf16.msra.mxu0 %v988
        %1002 = vmatprep.subr.bf16.mxu0 0
        %1003 = vmatpush1.bf16.msra.mxu0 %v950
        %1004 = vmatprep.subr.bf16.mxu0 0
        %1005 = vmatpush1.bf16.msra.mxu0 %v949
        %1006 = vmatprep.subr.bf16.mxu0 0
        %1007 = vmatpush2.bf16.msra.mxu0 0
        %1008 = vmatprep.subr.bf16.mxu0 0
        %1009 = vmatpush2.bf16.msra.mxu0 0
        %1010 = vmatprep.subr.bf16.mxu0 0
        %1011 = vmatpush2.bf16.msra.mxu0 0
        %1012 = vmatprep.subr.bf16.mxu0 0
        %1013 = vmatpush2.bf16.msra.mxu0 0
        %1014 = vmatprep.subr.bf16.mxu0 0
        %1015 = vmatpush2.bf16.msra.mxu0 0
        %1016 = vmatprep.subr.bf16.mxu0 0
        %1017 = vmatpush2.bf16.msra.mxu0 0
        %1018 = vmatprep.subr.bf16.mxu0 0
        %1019 = vmatpush2.bf16.msra.mxu0 0
        %1020 = vmatprep.subr.bf16.mxu0 0
        %1021 = vmatpush2.bf16.msra.mxu0 0
        %1022 = vmatprep.mubr.bf16.mxu0 0
        %1023 = vmatmul.mubr.bf16.gmra.mxu0 %v955
        %v1024 = vpop.f32.mrf.mxu0
        %v1025 = vadd.f32 %v938, %v1024
        %v1026 = vpop.f32.mrf.mxu0
        %v1027 = vpop.f32.mrf.mxu0
        %v1028 = vadd.f32 %v938, %v1027
        %v1029 = vpop.f32.mrf.mxu0
        %1030 = vmatprep.mubr.bf16.mxu0 0
        %1031 = vmatmul.mubr.bf16.gmra.mxu0 %v957
        %v1032 = vpop.f32.mrf.mxu0
        %v1033 = vadd.f32 %v938, %v1032
        %v1034 = vpop.f32.mrf.mxu0
        %v1035 = vpop.f32.mrf.mxu0
        %v1036 = vadd.f32 %v938, %v1035
        %v1037 = vpop.f32.mrf.mxu0
        %1038 = vmatprep.mubr.bf16.mxu0 0
        %1039 = vmatmul.mubr.bf16.gmra.mxu0 %v959
        %v1040 = vpop.f32.mrf.mxu0
        %v1041 = vadd.f32 %v938, %v1040
        %v1042 = vpop.f32.mrf.mxu0
        %v1043 = vpop.f32.mrf.mxu0
        %v1044 = vadd.f32 %v938, %v1043
        %v1045 = vpop.f32.mrf.mxu0
        %1046 = vmatprep.mubr.bf16.mxu0 0
        %1047 = vmatmul.mubr.bf16.gmra.mxu0 %v961
        %v1048 = vpop.f32.mrf.mxu0
        %v1049 = vadd.f32 %v938, %v1048
        %v1050 = vpop.f32.mrf.mxu0
        %v1051 = vpop.f32.mrf.mxu0
        %v1052 = vadd.f32 %v938, %v1051
        %v1053 = vpop.f32.mrf.mxu0
        %1054 = vmatprep.mubr.bf16.mxu0 0
        %1055 = vmatmul.mubr.bf16.gmra.mxu0 %v963
        %v1056 = vpop.f32.mrf.mxu0
        %v1057 = vadd.f32 %v938, %v1056
        %v1058 = vpop.f32.mrf.mxu0
        %v1059 = vpop.f32.mrf.mxu0
        %v1060 = vadd.f32 %v938, %v1059
        %v1061 = vpop.f32.mrf.mxu0
        %1062 = vmatprep.mubr.bf16.mxu0 0
        %1063 = vmatmul.mubr.bf16.gmra.mxu0 %v965
        %v1064 = vpop.f32.mrf.mxu0
        %v1065 = vadd.f32 %v938, %v1064
        %v1066 = vpop.f32.mrf.mxu0
        %v1067 = vpop.f32.mrf.mxu0
        %v1068 = vadd.f32 %v938, %v1067
        %v1069 = vpop.f32.mrf.mxu0
        %1070 = vmatprep.mubr.bf16.mxu0 0
        %1071 = vmatmul.mubr.bf16.gmra.mxu0 %v967
        %v1072 = vpop.f32.mrf.mxu0
        %v1073 = vadd.f32 %v938, %v1072
        %v1074 = vpop.f32.mrf.mxu0
        %v1075 = vpop.f32.mrf.mxu0
        %v1076 = vadd.f32 %v938, %v1075
        %v1077 = vpop.f32.mrf.mxu0
        %1078 = vmatprep.mubr.bf16.mxu0 0
        %1079 = vmatmul.mubr.bf16.gmra.mxu0 %v969
        %v1080 = vpop.f32.mrf.mxu0
        %v1081 = vadd.f32 %v938, %v1080
        %v1082 = vpop.f32.mrf.mxu0
        %v1083 = vpop.f32.mrf.mxu0
        %v1084 = vadd.f32 %v938, %v1083
        %v1085 = vpop.f32.mrf.mxu0
        %1086 = vmatprep.mubr.bf16.mxu0 0
        %1087 = vmatmul.mubr.bf16.gmra.mxu0 %v971
        %v1088 = vpop.f32.mrf.mxu0
        %v1089 = vadd.f32 %v938, %v1088
        %v1090 = vpop.f32.mrf.mxu0
        %v1091 = vpop.f32.mrf.mxu0
        %v1092 = vadd.f32 %v938, %v1091
        %v1093 = vpop.f32.mrf.mxu0
        %1094 = vmatprep.mubr.bf16.mxu0 0
        %1095 = vmatmul.mubr.bf16.gmra.mxu0 %v973
        %v1096 = vpop.f32.mrf.mxu0
        %v1097 = vadd.f32 %v938, %v1096
        %v1098 = vpop.f32.mrf.mxu0
        %v1099 = vpop.f32.mrf.mxu0
        %v1100 = vadd.f32 %v938, %v1099
        %v1101 = vpop.f32.mrf.mxu0
        %1102 = vmatprep.mubr.bf16.mxu0 0
        %1103 = vmatmul.mubr.bf16.gmra.mxu0 %v975
        %v1104 = vpop.f32.mrf.mxu0
        %v1105 = vadd.f32 %v938, %v1104
        %v1106 = vpop.f32.mrf.mxu0
        %v1107 = vpop.f32.mrf.mxu0
        %v1108 = vadd.f32 %v938, %v1107
        %v1109 = vpop.f32.mrf.mxu0
        %1110 = vmatprep.mubr.bf16.mxu0 0
        %1111 = vmatmul.mubr.bf16.gmra.mxu0 %v977
        %v1112 = vpop.f32.mrf.mxu0
        %v1113 = vadd.f32 %v938, %v1112
        %v1114 = vpop.f32.mrf.mxu0
        %v1115 = vpop.f32.mrf.mxu0
        %v1116 = vadd.f32 %v938, %v1115
        %v1117 = vpop.f32.mrf.mxu0
        %1118 = vmatprep.mubr.bf16.mxu0 0
        %1119 = vmatmul.mubr.bf16.gmra.mxu0 %v979
        %v1120 = vpop.f32.mrf.mxu0
        %v1121 = vadd.f32 %v938, %v1120
        %v1122 = vpop.f32.mrf.mxu0
        %v1123 = vpop.f32.mrf.mxu0
        %v1124 = vadd.f32 %v938, %v1123
        %v1125 = vpop.f32.mrf.mxu0
        %1126 = vmatprep.mubr.bf16.mxu0 0
        %1127 = vmatmul.mubr.bf16.gmra.mxu0 %v981
        %v1128 = vpop.f32.mrf.mxu0
        %v1129 = vadd.f32 %v938, %v1128
        %v1130 = vpop.f32.mrf.mxu0
        %v1131 = vpop.f32.mrf.mxu0
        %v1132 = vadd.f32 %v938, %v1131
        %v1133 = vpop.f32.mrf.mxu0
        %1134 = vmatprep.mubr.bf16.mxu0 0
        %1135 = vmatmul.mubr.bf16.gmra.mxu0 %v983
        %v1136 = vpop.f32.mrf.mxu0
        %v1137 = vadd.f32 %v938, %v1136
        %v1138 = vpop.f32.mrf.mxu0
        %v1139 = vpop.f32.mrf.mxu0
        %v1140 = vadd.f32 %v938, %v1139
        %v1141 = vpop.f32.mrf.mxu0
        %1142 = vmatprep.mubr.bf16.mxu0 0
        %1143 = vmatmul.mubr.bf16.gmra.mxu0 %v985
        %v1144 = vpop.f32.mrf.mxu0
        %v1145 = vadd.f32 %v938, %v1144
        %v1146 = vpop.f32.mrf.mxu0
        %v1147 = vpop.f32.mrf.mxu0
        %v1148 = vadd.f32 %v938, %v1147
        %v1149 = vpop.f32.mrf.mxu0
        %1150 = vdwg.mxu0
        %v1151 = vmax.f32 %v1025, 0.0
        %v1152 = vmax.f32 %v1028, 0.0
        %v1153 = vmax.f32 %v1033, 0.0
        %v1154 = vmax.f32 %v1036, 0.0
        %v1155 = vmax.f32 %v1041, 0.0
        %v1156 = vmax.f32 %v1044, 0.0
        %v1157 = vmax.f32 %v1049, 0.0
        %v1158 = vmax.f32 %v1052, 0.0
        %v1159 = vmax.f32 %v1057, 0.0
        %v1160 = vmax.f32 %v1060, 0.0
        %v1161 = vmax.f32 %v1065, 0.0
        %v1162 = vmax.f32 %v1068, 0.0
        %v1163 = vmax.f32 %v1073, 0.0
        %v1164 = vmax.f32 %v1076, 0.0
        %v1165 = vmax.f32 %v1081, 0.0
        %v1166 = vmax.f32 %v1084, 0.0
        %v1167 = vmax.f32 %v1089, 0.0
        %v1168 = vmax.f32 %v1092, 0.0
        %v1169 = vmax.f32 %v1097, 0.0
        %v1170 = vmax.f32 %v1100, 0.0
        %v1171 = vmax.f32 %v1105, 0.0
        %v1172 = vmax.f32 %v1108, 0.0
        %v1173 = vmax.f32 %v1113, 0.0
        %v1174 = vmax.f32 %v1116, 0.0
        %v1175 = vmax.f32 %v1121, 0.0
        %v1176 = vmax.f32 %v1124, 0.0
        %v1177 = vmax.f32 %v1129, 0.0
        %v1178 = vmax.f32 %v1132, 0.0
        %v1179 = vmax.f32 %v1137, 0.0
        %v1180 = vmax.f32 %v1140, 0.0
        %v1181 = vmax.f32 %v1145, 0.0
        %v1182 = vmax.f32 %v1148, 0.0
        %v1183 = vpack.c.bf16 %v1152, %v1151
        %v1184 = vpack.c.bf16 %v1154, %v1153
        %v1185 = vpack.c.bf16 %v1156, %v1155
        %v1186 = vpack.c.bf16 %v1158, %v1157
        %v1187 = vpack.c.bf16 %v1160, %v1159
        %v1188 = vpack.c.bf16 %v1162, %v1161
        %v1189 = vpack.c.bf16 %v1164, %v1163
        %v1190 = vpack.c.bf16 %v1166, %v1165
        %v1191 = vpack.c.bf16 %v1168, %v1167
        %v1192 = vpack.c.bf16 %v1170, %v1169
        %v1193 = vpack.c.bf16 %v1172, %v1171
        %v1194 = vpack.c.bf16 %v1174, %v1173
        %v1195 = vpack.c.bf16 %v1176, %v1175
        %v1196 = vpack.c.bf16 %v1178, %v1177
        %v1197 = vpack.c.bf16 %v1180, %v1179
        %v1198 = vpack.c.bf16 %v1182, %v1181
        %1215 = vrot.lane.b32.xlu0 %v832, 32
        %v1216 = vpop.permute.xlu0 %1215
        %1217 = vrot.lane.b32.xlu0 %v833, 32
        %v1218 = vpop.permute.xlu0 %1217
        %1219 = vrot.lane.b32.xlu0 %v834, 32
        %v1220 = vpop.permute.xlu0 %1219
        %1221 = vrot.lane.b32.xlu0 %v835, 32
        %v1222 = vpop.permute.xlu0 %1221
        %1223 = vrot.lane.b32.xlu0 %v836, 32
        %v1224 = vpop.permute.xlu0 %1223
        %1225 = vrot.lane.b32.xlu0 %v837, 32
        %v1226 = vpop.permute.xlu0 %1225
        %1227 = vrot.lane.b32.xlu0 %v838, 32
        %v1228 = vpop.permute.xlu0 %1227
        %1229 = vrot.lane.b32.xlu0 %v839, 32
        %v1230 = vpop.permute.xlu0 %1229
        %1231 = vrot.lane.b32.xlu0 %v840, 32
        %v1232 = vpop.permute.xlu0 %1231
        %1233 = vrot.lane.b32.xlu0 %v841, 32
        %v1234 = vpop.permute.xlu0 %1233
        %1235 = vrot.lane.b32.xlu0 %v842, 32
        %v1236 = vpop.permute.xlu0 %1235
        %1237 = vrot.lane.b32.xlu0 %v843, 32
        %v1238 = vpop.permute.xlu0 %1237
        %1239 = vrot.lane.b32.xlu0 %v844, 32
        %v1240 = vpop.permute.xlu0 %1239
        %1241 = vrot.lane.b32.xlu0 %v845, 32
        %v1242 = vpop.permute.xlu0 %1241
        %1243 = vrot.lane.b32.xlu0 %v846, 32
        %v1244 = vpop.permute.xlu0 %1243
        %1245 = vrot.lane.b32.xlu0 %v847, 32
        %v1246 = vpop.permute.xlu0 %1245
        %v1249 = vsel %vm590, %v1183, %v1216
        %v1252 = vsel %vm590, %v1184, %v1218
        %v1255 = vsel %vm590, %v1185, %v1220
        %v1258 = vsel %vm590, %v1186, %v1222
        %v1261 = vsel %vm590, %v1187, %v1224
        %v1264 = vsel %vm590, %v1188, %v1226
        %v1267 = vsel %vm590, %v1189, %v1228
        %v1270 = vsel %vm590, %v1190, %v1230
        %v1273 = vsel %vm590, %v1191, %v1232
        %v1276 = vsel %vm590, %v1192, %v1234
        %v1279 = vsel %vm590, %v1193, %v1236
        %v1282 = vsel %vm590, %v1194, %v1238
        %v1285 = vsel %vm590, %v1195, %v1240
        %v1288 = vsel %vm590, %v1196, %v1242
        %v1291 = vsel %vm590, %v1197, %v1244
        %v1294 = vsel %vm590, %v1198, %v1246
        %v1295 = vld [vmem:[%s175 + $0x30] sm:$0xf]
        %v1296 = vld [vmem:[%s175 + $0x34] sm:$0xf]
        %v1297 = vld [vmem:[%s175 + $0x38] sm:$0xf]
        %v1298 = vld [vmem:[%s175 + $0x3c] sm:$0xf]
        %v1299 = vld [vmem:[%s175 + $0x40] sm:$0xf]
        %v1300 = vld [vmem:[%s175 + $0x44] sm:$0xf]
        %v1301 = vld [vmem:[%s175 + $0x48] sm:$0xf]
        %v1302 = vld [vmem:[%s175 + $0x4c] sm:$0xf]
        %v1303 = vlaneseq
        %v1304 = vshrl.u32 %v1303, 7
        %v1305 = vsub.s32 3, %v1304
        %v1306 = vrot.slane %v934, %v1305
        %v1315 = vunpack.c.l.b16 %v1295
        %v1316 = vunpack.c.l.b16 %v1296
        %v1317 = vunpack.c.l.b16 %v1297
        %v1318 = vunpack.c.l.b16 %v1298
        %v1319 = vunpack.c.l.b16 %v1299
        %v1320 = vunpack.c.l.b16 %v1300
        %v1321 = vunpack.c.l.b16 %v1301
        %v1322 = vunpack.c.l.b16 %v1302
        %v1323 = vpack.c.b16 %v1316, %v1315
        %v1324 = vpack.c.b16 %v1318, %v1317
        %v1325 = vpack.c.b16 %v1320, %v1319
        %v1326 = vpack.c.b16 %v1322, %v1321
        %vm1331 = vcmask 523264
        %v1332 = vsel %vm1331, %v1249, 0
        %v1334 = vsel %vm1331, %v1252, 0
        %v1336 = vsel %vm1331, %v1255, 0
        %v1338 = vsel %vm1331, %v1258, 0
        %v1340 = vsel %vm1331, %v1261, 0
        %v1342 = vsel %vm1331, %v1264, 0
        %v1344 = vsel %vm1331, %v1267, 0
        %v1346 = vsel %vm1331, %v1270, 0
        %v1348 = vsel %vm1331, %v1273, 0
        %v1350 = vsel %vm1331, %v1276, 0
        %v1352 = vsel %vm1331, %v1279, 0
        %v1354 = vsel %vm1331, %v1282, 0
        %v1356 = vsel %vm1331, %v1285, 0
        %v1358 = vsel %vm1331, %v1288, 0
        %v1360 = vsel %vm1331, %v1291, 0
        %v1362 = vsel %vm1331, %v1294, 0
        %1364 = vmatprep.subr.bf16.mxu0 0
        %1365 = vmatpush1.bf16.msra.mxu0 0
        %1366 = vmatprep.subr.bf16.mxu0 0
        %1367 = vmatpush1.bf16.msra.mxu0 0
        %1368 = vmatprep.subr.bf16.mxu0 0
        %1369 = vmatpush1.bf16.msra.mxu0 0
        %1370 = vmatprep.subr.bf16.mxu0 0
        %1371 = vmatpush1.bf16.msra.mxu0 0
        %1372 = vmatprep.subr.bf16.mxu0 0
        %1373 = vmatpush1.bf16.msra.mxu0 %v1326
        %1374 = vmatprep.subr.bf16.mxu0 0
        %1375 = vmatpush1.bf16.msra.mxu0 %v1325
        %1376 = vmatprep.subr.bf16.mxu0 0
        %1377 = vmatpush1.bf16.msra.mxu0 %v1324
        %1378 = vmatprep.subr.bf16.mxu0 0
        %1379 = vmatpush1.bf16.msra.mxu0 %v1323
        %1380 = vmatprep.subr.bf16.mxu0 0
        %1381 = vmatpush2.bf16.msra.mxu0 0
        %1382 = vmatprep.subr.bf16.mxu0 0
        %1383 = vmatpush2.bf16.msra.mxu0 0
        %1384 = vmatprep.subr.bf16.mxu0 0
        %1385 = vmatpush2.bf16.msra.mxu0 0
        %1386 = vmatprep.subr.bf16.mxu0 0
        %1387 = vmatpush2.bf16.msra.mxu0 0
        %1388 = vmatprep.subr.bf16.mxu0 0
        %1389 = vmatpush2.bf16.msra.mxu0 0
        %1390 = vmatprep.subr.bf16.mxu0 0
        %1391 = vmatpush2.bf16.msra.mxu0 0
        %1392 = vmatprep.subr.bf16.mxu0 0
        %1393 = vmatpush2.bf16.msra.mxu0 0
        %1394 = vmatprep.subr.bf16.mxu0 0
        %1395 = vmatpush2.bf16.msra.mxu0 0
        %1396 = vmatprep.mubr.bf16.mxu0 0
        %1397 = vmatmul.mubr.bf16.gmra.mxu0 %v1332
        %v1398 = vpop.f32.mrf.mxu0
        %v1399 = vadd.f32 %v1306, %v1398
        %v1400 = vpop.f32.mrf.mxu0
        %v1401 = vpop.f32.mrf.mxu0
        %v1402 = vadd.f32 %v1306, %v1401
        %v1403 = vpop.f32.mrf.mxu0
        %1404 = vmatprep.mubr.bf16.mxu0 0
        %1405 = vmatmul.mubr.bf16.gmra.mxu0 %v1334
        %v1406 = vpop.f32.mrf.mxu0
        %v1407 = vadd.f32 %v1306, %v1406
        %v1408 = vpop.f32.mrf.mxu0
        %v1409 = vpop.f32.mrf.mxu0
        %v1410 = vadd.f32 %v1306, %v1409
        %v1411 = vpop.f32.mrf.mxu0
        %1412 = vmatprep.mubr.bf16.mxu0 0
        %1413 = vmatmul.mubr.bf16.gmra.mxu0 %v1336
        %v1414 = vpop.f32.mrf.mxu0
        %v1415 = vadd.f32 %v1306, %v1414
        %v1416 = vpop.f32.mrf.mxu0
        %v1417 = vpop.f32.mrf.mxu0
        %v1418 = vadd.f32 %v1306, %v1417
        %v1419 = vpop.f32.mrf.mxu0
        %1420 = vmatprep.mubr.bf16.mxu0 0
        %1421 = vmatmul.mubr.bf16.gmra.mxu0 %v1338
        %v1422 = vpop.f32.mrf.mxu0
        %v1423 = vadd.f32 %v1306, %v1422
        %v1424 = vpop.f32.mrf.mxu0
        %v1425 = vpop.f32.mrf.mxu0
        %v1426 = vadd.f32 %v1306, %v1425
        %v1427 = vpop.f32.mrf.mxu0
        %1428 = vmatprep.mubr.bf16.mxu0 0
        %1429 = vmatmul.mubr.bf16.gmra.mxu0 %v1340
        %v1430 = vpop.f32.mrf.mxu0
        %v1431 = vadd.f32 %v1306, %v1430
        %v1432 = vpop.f32.mrf.mxu0
        %v1433 = vpop.f32.mrf.mxu0
        %v1434 = vadd.f32 %v1306, %v1433
        %v1435 = vpop.f32.mrf.mxu0
        %1436 = vmatprep.mubr.bf16.mxu0 0
        %1437 = vmatmul.mubr.bf16.gmra.mxu0 %v1342
        %v1438 = vpop.f32.mrf.mxu0
        %v1439 = vadd.f32 %v1306, %v1438
        %v1440 = vpop.f32.mrf.mxu0
        %v1441 = vpop.f32.mrf.mxu0
        %v1442 = vadd.f32 %v1306, %v1441
        %v1443 = vpop.f32.mrf.mxu0
        %1444 = vmatprep.mubr.bf16.mxu0 0
        %1445 = vmatmul.mubr.bf16.gmra.mxu0 %v1344
        %v1446 = vpop.f32.mrf.mxu0
        %v1447 = vadd.f32 %v1306, %v1446
        %v1448 = vpop.f32.mrf.mxu0
        %v1449 = vpop.f32.mrf.mxu0
        %v1450 = vadd.f32 %v1306, %v1449
        %v1451 = vpop.f32.mrf.mxu0
        %1452 = vmatprep.mubr.bf16.mxu0 0
        %1453 = vmatmul.mubr.bf16.gmra.mxu0 %v1346
        %v1454 = vpop.f32.mrf.mxu0
        %v1455 = vadd.f32 %v1306, %v1454
        %v1456 = vpop.f32.mrf.mxu0
        %v1457 = vpop.f32.mrf.mxu0
        %v1458 = vadd.f32 %v1306, %v1457
        %v1459 = vpop.f32.mrf.mxu0
        %1460 = vmatprep.mubr.bf16.mxu0 0
        %1461 = vmatmul.mubr.bf16.gmra.mxu0 %v1348
        %v1462 = vpop.f32.mrf.mxu0
        %v1463 = vadd.f32 %v1306, %v1462
        %v1464 = vpop.f32.mrf.mxu0
        %v1465 = vpop.f32.mrf.mxu0
        %v1466 = vadd.f32 %v1306, %v1465
        %v1467 = vpop.f32.mrf.mxu0
        %1468 = vmatprep.mubr.bf16.mxu0 0
        %1469 = vmatmul.mubr.bf16.gmra.mxu0 %v1350
        %v1470 = vpop.f32.mrf.mxu0
        %v1471 = vadd.f32 %v1306, %v1470
        %v1472 = vpop.f32.mrf.mxu0
        %v1473 = vpop.f32.mrf.mxu0
        %v1474 = vadd.f32 %v1306, %v1473
        %v1475 = vpop.f32.mrf.mxu0
        %1476 = vmatprep.mubr.bf16.mxu0 0
        %1477 = vmatmul.mubr.bf16.gmra.mxu0 %v1352
        %v1478 = vpop.f32.mrf.mxu0
        %v1479 = vadd.f32 %v1306, %v1478
        %v1480 = vpop.f32.mrf.mxu0
        %v1481 = vpop.f32.mrf.mxu0
        %v1482 = vadd.f32 %v1306, %v1481
        %v1483 = vpop.f32.mrf.mxu0
        %1484 = vmatprep.mubr.bf16.mxu0 0
        %1485 = vmatmul.mubr.bf16.gmra.mxu0 %v1354
        %v1486 = vpop.f32.mrf.mxu0
        %v1487 = vadd.f32 %v1306, %v1486
        %v1488 = vpop.f32.mrf.mxu0
        %v1489 = vpop.f32.mrf.mxu0
        %v1490 = vadd.f32 %v1306, %v1489
        %v1491 = vpop.f32.mrf.mxu0
        %1492 = vmatprep.mubr.bf16.mxu0 0
        %1493 = vmatmul.mubr.bf16.gmra.mxu0 %v1356
        %v1494 = vpop.f32.mrf.mxu0
        %v1495 = vadd.f32 %v1306, %v1494
        %v1496 = vpop.f32.mrf.mxu0
        %v1497 = vpop.f32.mrf.mxu0
        %v1498 = vadd.f32 %v1306, %v1497
        %v1499 = vpop.f32.mrf.mxu0
        %1500 = vmatprep.mubr.bf16.mxu0 0
        %1501 = vmatmul.mubr.bf16.gmra.mxu0 %v1358
        %v1502 = vpop.f32.mrf.mxu0
        %v1503 = vadd.f32 %v1306, %v1502
        %v1504 = vpop.f32.mrf.mxu0
        %v1505 = vpop.f32.mrf.mxu0
        %v1506 = vadd.f32 %v1306, %v1505
        %v1507 = vpop.f32.mrf.mxu0
        %1508 = vmatprep.mubr.bf16.mxu0 0
        %1509 = vmatmul.mubr.bf16.gmra.mxu0 %v1360
        %v1510 = vpop.f32.mrf.mxu0
        %v1511 = vadd.f32 %v1306, %v1510
        %v1512 = vpop.f32.mrf.mxu0
        %v1513 = vpop.f32.mrf.mxu0
        %v1514 = vadd.f32 %v1306, %v1513
        %v1515 = vpop.f32.mrf.mxu0
        %1516 = vmatprep.mubr.bf16.mxu0 0
        %1517 = vmatmul.mubr.bf16.gmra.mxu0 %v1362
        %v1518 = vpop.f32.mrf.mxu0
        %v1519 = vadd.f32 %v1306, %v1518
        %v1520 = vpop.f32.mrf.mxu0
        %v1521 = vpop.f32.mrf.mxu0
        %v1522 = vadd.f32 %v1306, %v1521
        %v1523 = vpop.f32.mrf.mxu0
        %1524 = vdwg.mxu0
        %1525 = vst [vmem:[%s181] sm:$0xff] %v1399
        %1526 = vst [vmem:[%s181 + $0x8] sm:$0xff] %v1402
        %1527 = vst [vmem:[%s181 + $0x10] sm:$0xff] %v1407
        %1528 = vst [vmem:[%s181 + $0x18] sm:$0xff] %v1410
        %1529 = vst [vmem:[%s181 + $0x20] sm:$0xff] %v1415
        %1530 = vst [vmem:[%s181 + $0x28] sm:$0xff] %v1418
        %1531 = vst [vmem:[%s181 + $0x30] sm:$0xff] %v1423
        %1532 = vst [vmem:[%s181 + $0x38] sm:$0xff] %v1426
        %1533 = vst [vmem:[%s181 + $0x40] sm:$0xff] %v1431
        %1534 = vst [vmem:[%s181 + $0x48] sm:$0xff] %v1434
        %1535 = vst [vmem:[%s181 + $0x50] sm:$0xff] %v1439
        %1536 = vst [vmem:[%s181 + $0x58] sm:$0xff] %v1442
        %1537 = vst [vmem:[%s181 + $0x60] sm:$0xff] %v1447
        %1538 = vst [vmem:[%s181 + $0x68] sm:$0xff] %v1450
        %1539 = vst [vmem:[%s181 + $0x70] sm:$0xff] %v1455
        %1540 = vst [vmem:[%s181 + $0x78] sm:$0xff] %v1458
        %1541 = vst [vmem:[%s181 + $0x80] sm:$0xff] %v1463
        %1542 = vst [vmem:[%s181 + $0x88] sm:$0xff] %v1466
        %1543 = vst [vmem:[%s181 + $0x90] sm:$0xff] %v1471
        %1544 = vst [vmem:[%s181 + $0x98] sm:$0xff] %v1474
        %1545 = vst [vmem:[%s181 + $0xa0] sm:$0xff] %v1479
        %1546 = vst [vmem:[%s181 + $0xa8] sm:$0xff] %v1482
        %1547 = vst [vmem:[%s181 + $0xb0] sm:$0xff] %v1487
        %1548 = vst [vmem:[%s181 + $0xb8] sm:$0xff] %v1490
        %1549 = vst [vmem:[%s181 + $0xc0] sm:$0xff] %v1495
        %1550 = vst [vmem:[%s181 + $0xc8] sm:$0xff] %v1498
        %1551 = vst [vmem:[%s181 + $0xd0] sm:$0xff] %v1503
        %1552 = vst [vmem:[%s181 + $0xd8] sm:$0xff] %v1506
        %1553 = vst [vmem:[%s181 + $0xe0] sm:$0xff] %v1511
        %1554 = vst [vmem:[%s181 + $0xe8] sm:$0xff] %v1514
        %1555 = vst [vmem:[%s181 + $0xf0] sm:$0xff] %v1519
        %1556 = vst [vmem:[%s181 + $0xf8] sm:$0xff] %v1522
      $region32: #{batched_kilonerf_forward.1} parent=27 // pred_fallthru
        _
      %s1557 = smul.u32 32, %s22
      %p1558 = scmp.lt.s32.totalorder %s1557, 223
      %s1559 = scalar_select %p1558, %s1557, 223
      %s1560 = smul.addr %s1559, 8
      %s1561 = scalar_lea.vmem %s4, %s1560
      // Predicated region
      $region33: #{batched_kilonerf_forward.1} parent=27 // pred_check
        %p1562 = pneg %p94
      $region34: #{batched_kilonerf_forward.1} parent=27 // pred_check_branch
        %1564 = sbr.rel (%p1562) target = $region36
      $region35: #{batched_kilonerf_forward.1} parent=27 // pred_region
        %s1565 = smul.u32 32, %s22
      $region36: #{batched_kilonerf_forward.1} parent=27 // pred_fallthru
        _
    $region28: #{batched_kilonerf_forward.1} parent=5 // pred_fallthru
      _
    %p1566 = scmp.le.s32.totalorder 2, %s17
    // Predicated region
    $region37: #{batched_kilonerf_forward.1} parent=5 // pred_check
      %p1567 = pneg %p1566
    $region38: #{batched_kilonerf_forward.1} parent=5 // pred_check_branch
      %1569 = sbr.rel (%p1567) target = $region40
    $region39: #{batched_kilonerf_forward.1} parent=5 // pred_region
      %s1570 = ssub.s32 %s17, 2
      // Predicated region
      $region41: #{batched_kilonerf_forward.1} parent=39 // pred_check
        %p1571 = pneg %p100
      $region42: #{batched_kilonerf_forward.1} parent=39 // pred_check_branch
        %1573 = sbr.rel (%p1571) target = $region44
      $region43: #{batched_kilonerf_forward.1} parent=39 // pred_region
        %s1574 = smul.u32 32, %s23
        %p1575 = scmp.lt.s32.totalorder %s1574, 223
        %s1576 = scalar_select %p1575, %s1574, 223
        %s1577 = smul.addr %s1576, 8
        %s1578 = scalar_lea.vmem %s4, %s1577
      $region44: #{batched_kilonerf_forward.1} parent=39 // pred_fallthru
        _
    $region40: #{batched_kilonerf_forward.1} parent=5 // pred_fallthru
      _
  $region6: #{batched_kilonerf_forward.1} parent=0 // loop_footer
    %s21 = sadd.s32 1, %s17
  $region7: #{batched_kilonerf_forward.1} parent=0 // loop_footer_branch
    %16 = sbr.rel target = $region3
  $region8: #{batched_kilonerf_forward.1} parent=0 // loop_exit
    _

</llo_original>
